<compile_context>
chip_gen: v7x
topology: tpu7x:2x2x1
jax: 0.10.0
libtpu: 0.0.40
codegen_flags: <defaults>
</compile_context>

<pallas_src>
import functools

import jax
import jax.numpy as jnp
from jax.experimental import pallas as pl
from jax.experimental.pallas import tpu as pltpu


def _round_up(x, m):
    return (x + m - 1) // m * m


def _residual_conv_kernel(W,
                          x_ref, m_ref,
                          a1_ref, c1_ref,
                          w1_ref, b1_ref,
                          w2_ref, b2_ref,
                          ws_ref, bs_ref,
                          o_ref):
    """Fused ResidualConv forward for one batch tile (batch packed into lanes).

    x_ref  : (Cpad_in, BT*H*W)            input, channels zero-padded to 8-mult
    m_ref  : (9, BT*H*W)                  per-tap zero-padding validity masks
    a1,c1  : (Cpad_in, 1)                 BN1 scale / shift (zero in pad rows)
    w1,b1  : (Cpad_out, 9*Cpad_in), (Cpad_out, 1)   conv1 with BN2 folded in
    w2,b2  : (Cout, 9*Cpad_out), (Cout, 1)          conv2
    ws,bs  : (Cout, 9*Cpad_in), (Cout, 1)           conv_skip with BN_skip folded
    o_ref  : (Cout, BT*H*W)
    """
    BHW = x_ref.shape[-1]
    masks = m_ref[...]                       # (9, BHW), resident across steps
    mm_dtype = w1_ref.dtype                  # matmul operand dtype (f32 or bf16)

    def taps_of(z):
        # z: (Cp, BHW).  Returns the 9 shifted+masked tap blocks, each a whole
        # number of (8,128) tiles (Cp is a multiple of 8), built as values.
        out = []
        t = 0
        for dh in (-1, 0, 1):
            for dw in (-1, 0, 1):
                s = dh * W + dw
                if s == 0:
                    out.append(z)                                    # center tap
                else:
                    tap = pltpu.roll(z, shift=(-s) % BHW, axis=1)    # XLU rotate
                    out.append(tap * masks[t:t + 1, :])              # zero pad
                t += 1
        return out

    def mxu(w_ref, tap_blocks, b_ref):
        # One K=9*Cpad matmul: tile-aligned concatenate of the 9 tap blocks.
        p = jnp.concatenate(tap_blocks, axis=0).astype(mm_dtype)
        return jnp.dot(w_ref[...], p, preferred_element_type=jnp.float32) + b_ref[...]

    x = x_ref[...]                                           # (Cpad_in, BHW)
    taps_x = taps_of(x)                                      # 8 rolls, shared

    # --- conv_skip (BN_skip folded) — reuses the raw-x tap blocks ------------
    sk = mxu(ws_ref, taps_x, bs_ref)                         # (Cout, BHW)

    # --- conv_block -----------------------------------------------------------
    # BN1 + ReLU applied per tap: roll commutes with the per-channel affine, and
    # re-masking keeps the zero-padded positions exactly zero after the +c1.
    a1 = a1_ref[...]
    c1 = c1_ref[...]
    taps_z0 = []
    for t in range(9):
        v = jnp.maximum(a1 * taps_x[t] + c1, 0.0)
        if t != 4:                                           # center mask == 1
            v = v * masks[t:t + 1, :]
        taps_z0.append(v)

    # Conv1 (BN2 folded) + ReLU : (Cpad_out, 9*Cpad_in) x (9*Cpad_in, BHW).
    z1 = jnp.maximum(mxu(w1_ref, taps_z0, b1_ref), 0.0)      # (Cpad_out, BHW)
    # Conv2 : (Cout, 9*Cpad_out) x (9*Cpad_out, BHW).
    z3 = mxu(w2_ref, taps_of(z1), b2_ref)                    # (Cout, BHW)

    o_ref[...] = (z3 + sk).astype(o_ref.dtype)               # lane-dense store


def _fold_bn(gamma, beta, mean, var, eps):
    a = gamma / jnp.sqrt(var + eps)
    return a, beta - mean * a


def _flatten_conv_weight(w_oihw, cpad):
    # (Cout, Cin, 3, 3) -> (Cout, 9*Cpad), tap-major / channel-minor, channel
    # stride padded to cpad so it matches the sublane-aligned patch blocks.
    o, c, kh, kw = w_oihw.shape
    w = jnp.transpose(w_oihw, (0, 2, 3, 1))                  # (O, kh, kw, C)
    w = jnp.pad(w, ((0, 0), (0, 0), (0, 0), (0, cpad - c)))
    return w.reshape(o, kh * kw * cpad)


def _pick_batch_tile(N, HW, requested):
    if requested is not None:
        bt = max(1, min(int(requested), N))
    else:
        # Target ~512-1024 output lanes per step (amortizes per-step overhead and
        # keeps weights MXU-stationary).  For large N this still leaves >= 2
        # parallel grid steps so both v7x TensorCores get work.
        bt = max(1, min(N, max(1, 1024 // HW)))
    while N % bt:                                            # need a divisor of N
        bt -= 1
    return bt


def residual_conv_forward(x, params, *, eps=1e-5, batch_tile=None,
                          compute_dtype=jnp.float32):
    """Forward of ResidualConv(input_dim, output_dim, stride=1, padding=1).

    x: (N, Cin, H, W) float32 (PyTorch NCHW). Returns (N, Cout, H, W) float32.
    BatchNorm is applied in inference mode (running statistics).
    compute_dtype=jnp.bfloat16 enables the fast MXU path on v6e/v7x (re-check
    tolerances if used); elementwise math stays f32 either way.
    """
    N, Cin, H, W = x.shape
    Cout = params["conv1_w"].shape[0]
    HW = H * W

    cpin = _round_up(Cin, 8)
    cpout = _round_up(Cout, 8)
    bt = _pick_batch_tile(N, HW, batch_tile)
    bhw = bt * HW
    grid = (N // bt,)

    # ---- fold the BatchNorms -------------------------------------------------
    a1, c1 = _fold_bn(params["bn1_g"], params["bn1_b"],
                      params["bn1_m"], params["bn1_v"], eps)   # stays explicit
    a2, c2 = _fold_bn(params["bn2_g"], params["bn2_b"],
                      params["bn2_m"], params["bn2_v"], eps)   # folds into conv1
    a3, c3 = _fold_bn(params["bns_g"], params["bns_b"],
                      params["bns_m"], params["bns_v"], eps)   # folds into conv_skip

    w1f = a2[:, None] * _flatten_conv_weight(params["conv1_w"], cpin)
    b1f = a2 * params["conv1_b"] + c2
    # Pad conv1's output rows to cpout so conv2's input taps are sublane aligned.
    w1f = jnp.pad(w1f, ((0, cpout - Cout), (0, 0))).astype(compute_dtype)
    b1f = jnp.pad(b1f, ((0, cpout - Cout),))[:, None].astype(jnp.float32)

    w2f = _flatten_conv_weight(params["conv2_w"], cpout).astype(compute_dtype)
    b2f = params["conv2_b"][:, None].astype(jnp.float32)

    wsf = (a3[:, None] * _flatten_conv_weight(params["convs_w"], cpin)
           ).astype(compute_dtype)
    bsf = (a3 * params["convs_b"] + c3)[:, None].astype(jnp.float32)

    a1c = jnp.pad(a1, ((0, cpin - Cin),))[:, None].astype(jnp.float32)
    c1c = jnp.pad(c1, ((0, cpin - Cin),))[:, None].astype(jnp.float32)

    # ---- per-tap validity masks (conv zero padding), tiled per batch tile ----
    ii = jnp.arange(H)[:, None]
    jj = jnp.arange(W)[None, :]
    masks = []
    for dh in (-1, 0, 1):
        for dw in (-1, 0, 1):
            valid = ((ii + dh >= 0) & (ii + dh < H) &
                     (jj + dw >= 0) & (jj + dw < W))
            masks.append(valid.reshape(HW))
    tap_masks = jnp.tile(jnp.stack(masks).astype(jnp.float32), (1, bt))  # (9,bhw)

    # ---- batch packed into the lane axis: (Cpad_in, N*HW) --------------------
    x_t = jnp.transpose(x.reshape(N, Cin, HW), (1, 0, 2)).reshape(Cin, N * HW)
    x_t = jnp.pad(x_t, ((0, cpin - Cin), (0, 0)))

    # ---- VMEM budget + cost estimate -----------------------------------------
    elt = 4
    w_elt = jnp.dtype(compute_dtype).itemsize
    patch_rows = 9 * max(cpin, cpout)
    vmem_est = (2 * cpin * bhw * elt                 # x tile, double buffered
                + 2 * Cout * bhw * elt               # out tile, double buffered
                + 2 * 16 * bhw * elt                 # masks (9 rows -> 16 padded)
                + 2 * (w1f.size + w2f.size + wsf.size) * w_elt
                + 2 * (b1f.size + b2f.size + bsf.size + a1c.size + c1c.size) * elt
                + 4 * patch_rows * bhw * elt         # live patch operands / spill
                + 6 * cpout * bhw * elt)             # sk / z1 / z3 intermediates
    vmem_limit = int(min(64 * 1024 * 1024, max(2 * vmem_est, 32 * 1024 * 1024)))

    flops = 2 * N * HW * 9 * (cpin * cpout + cpout * Cout + cpin * Cout)
    bytes_accessed = int(x_t.size * elt + Cout * N * HW * elt
                         + (w1f.size + w2f.size + wsf.size) * w_elt
                         + tap_masks.size * elt)

    kernel = functools.partial(_residual_conv_kernel, W)
    const = lambda n: (0, 0)

    out_t = pl.pallas_call(
        kernel,
        out_shape=jax.ShapeDtypeStruct((Cout, N * HW), x.dtype),
        grid=grid,
        in_specs=[
            pl.BlockSpec((cpin, bhw), lambda n: (0, n)),     # x (batch tile n)
            pl.BlockSpec((9, bhw), const),                   # tap masks
            pl.BlockSpec((cpin, 1), const),                  # BN1 scale
            pl.BlockSpec((cpin, 1), const),                  # BN1 shift
            pl.BlockSpec((cpout, 9 * cpin), const),          # conv1 (+BN2)
            pl.BlockSpec((cpout, 1), const),
            pl.BlockSpec((Cout, 9 * cpout), const),          # conv2
            pl.BlockSpec((Cout, 1), const),
            pl.BlockSpec((Cout, 9 * cpin), const),           # conv_skip (+BN_s)
            pl.BlockSpec((Cout, 1), const),
        ],
        out_specs=pl.BlockSpec((Cout, bhw), lambda n: (0, n)),
        compiler_params=pltpu.CompilerParams(
            dimension_semantics=("parallel",),
            vmem_limit_bytes=vmem_limit),
        cost_estimate=pl.CostEstimate(flops=flops, transcendentals=0,
                                      bytes_accessed=bytes_accessed),
    )(x_t, tap_masks, a1c, c1c, w1f, b1f, w2f, b2f, wsf, bsf)

    return jnp.transpose(out_t.reshape(Cout, N, HW), (1, 0, 2)).reshape(
        N, Cout, H, W)


def _reference(x, params, eps=1e-5):
    def bn(y, g, b, m, v):
        sh = (1, -1, 1, 1)
        return (g.reshape(sh) * (y - m.reshape(sh))
                / jnp.sqrt(v.reshape(sh) + eps) + b.reshape(sh))

    def conv(y, w, b):
        out = jax.lax.conv_general_dilated(
            y, w, window_strides=(1, 1), padding=((1, 1), (1, 1)),
            dimension_numbers=("NCHW", "OIHW", "NCHW"),
            precision=jax.lax.Precision.HIGHEST)
        return out + b.reshape(1, -1, 1, 1)

    z = jnp.maximum(bn(x, params["bn1_g"], params["bn1_b"],
                       params["bn1_m"], params["bn1_v"]), 0.0)
    z = conv(z, params["conv1_w"], params["conv1_b"])
    z = jnp.maximum(bn(z, params["bn2_g"], params["bn2_b"],
                       params["bn2_m"], params["bn2_v"]), 0.0)
    z = conv(z, params["conv2_w"], params["conv2_b"])
    s = bn(conv(x, params["convs_w"], params["convs_b"]),
           params["bns_g"], params["bns_b"], params["bns_m"], params["bns_v"])
    return z + s


if __name__ == "__main__":
    N, CIN, COUT, H, W = 2, 4, 8, 16, 16

    key = jax.random.PRNGKey(0)
    keys = jax.random.split(key, 20)

    def uni(k, shape, bound):
        return jax.random.uniform(k, shape, jnp.float32, -bound, bound)

    bnd1 = 1.0 / (CIN * 9) ** 0.5
    bnd2 = 1.0 / (COUT * 9) ** 0.5

    params = {
        # BN1 (over Cin)
        "bn1_g": jax.random.uniform(keys[0], (CIN,), jnp.float32, 0.5, 1.5),
        "bn1_b": 0.1 * jax.random.normal(keys[1], (CIN,), jnp.float32),
        "bn1_m": 0.1 * jax.random.normal(keys[2], (CIN,), jnp.float32),
        "bn1_v": jax.random.uniform(keys[3], (CIN,), jnp.float32, 0.5, 1.5),
        # conv1: Cin -> Cout
        "conv1_w": uni(keys[4], (COUT, CIN, 3, 3), bnd1),
        "conv1_b": uni(keys[5], (COUT,), bnd1),
        # BN2 (over Cout)
        "bn2_g": jax.random.uniform(keys[6], (COUT,), jnp.float32, 0.5, 1.5),
        "bn2_b": 0.1 * jax.random.normal(keys[7], (COUT,), jnp.float32),
        "bn2_m": 0.1 * jax.random.normal(keys[8], (COUT,), jnp.float32),
        "bn2_v": jax.random.uniform(keys[9], (COUT,), jnp.float32, 0.5, 1.5),
        # conv2: Cout -> Cout
        "conv2_w": uni(keys[10], (COUT, COUT, 3, 3), bnd2),
        "conv2_b": uni(keys[11], (COUT,), bnd2),
        # conv_skip: Cin -> Cout, then BN_skip (over Cout)
        "convs_w": uni(keys[12], (COUT, CIN, 3, 3), bnd1),
        "convs_b": uni(keys[13], (COUT,), bnd1),
        "bns_g": jax.random.uniform(keys[14], (COUT,), jnp.float32, 0.5, 1.5),
        "bns_b": 0.1 * jax.random.normal(keys[15], (COUT,), jnp.float32),
        "bns_m": 0.1 * jax.random.normal(keys[16], (COUT,), jnp.float32),
        "bns_v": jax.random.uniform(keys[17], (COUT,), jnp.float32, 0.5, 1.5),
    }

    x = jax.random.normal(keys[18], (N, CIN, H, W), dtype=jnp.float32)

    out = residual_conv_forward(x, params)
    out = jax.block_until_ready(out)

    ref = _reference(x, params)
    assert out.shape == (N, COUT, H, W)
    err = float(jnp.max(jnp.abs(out - ref)))
    assert jnp.allclose(out, ref, atol=1e-3, rtol=1e-3), err

    print("KERNEL_OK")
</pallas_src>

<mosaic_0001>
module attributes {stable_mosaic.version = 11 : i64} {
  func.func @_residual_conv_kernel(%arg0: i32, %arg1: memref<8x512xf32, #tpu.memory_space<vmem>>, %arg2: memref<9x512xf32, #tpu.memory_space<vmem>>, %arg3: memref<8x1xf32, #tpu.memory_space<vmem>>, %arg4: memref<8x1xf32, #tpu.memory_space<vmem>>, %arg5: memref<8x72xf32, #tpu.memory_space<vmem>>, %arg6: memref<8x1xf32, #tpu.memory_space<vmem>>, %arg7: memref<8x72xf32, #tpu.memory_space<vmem>>, %arg8: memref<8x1xf32, #tpu.memory_space<vmem>>, %arg9: memref<8x72xf32, #tpu.memory_space<vmem>>, %arg10: memref<8x1xf32, #tpu.memory_space<vmem>>, %arg11: memref<8x512xf32, #tpu.memory_space<vmem>>) attributes {dimension_semantics = [#tpu.dimension_semantics<parallel>], iteration_bounds = array<i64: 1>, scalar_prefetch = 0 : i64, scratch_operands = 0 : i64, tpu.core_type = #tpu.core_type<tc>, window_params = [{transform_indices = @transform_0, window_bounds = array<i64: 8, 512>}, {pipeline_mode = #tpu.pipeline_mode<synchronous>, transform_indices = @transform_1, window_bounds = array<i64: 9, 512>}, {pipeline_mode = #tpu.pipeline_mode<synchronous>, transform_indices = @transform_2, window_bounds = array<i64: 8, 1>}, {pipeline_mode = #tpu.pipeline_mode<synchronous>, transform_indices = @transform_3, window_bounds = array<i64: 8, 1>}, {pipeline_mode = #tpu.pipeline_mode<synchronous>, transform_indices = @transform_4, window_bounds = array<i64: 8, 72>}, {pipeline_mode = #tpu.pipeline_mode<synchronous>, transform_indices = @transform_5, window_bounds = array<i64: 8, 1>}, {pipeline_mode = #tpu.pipeline_mode<synchronous>, transform_indices = @transform_6, window_bounds = array<i64: 8, 72>}, {pipeline_mode = #tpu.pipeline_mode<synchronous>, transform_indices = @transform_7, window_bounds = array<i64: 8, 1>}, {pipeline_mode = #tpu.pipeline_mode<synchronous>, transform_indices = @transform_8, window_bounds = array<i64: 8, 72>}, {pipeline_mode = #tpu.pipeline_mode<synchronous>, transform_indices = @transform_9, window_bounds = array<i64: 8, 1>}, {transform_indices = @transform_10, window_bounds = array<i64: 8, 512>}]} {
    %c0 = arith.constant 0 : index
    %c0_0 = arith.constant 0 : index
    %0 = vector.load %arg2[%c0, %c0_0] : memref<9x512xf32, #tpu.memory_space<vmem>>, vector<9x512xf32>
    %c0_1 = arith.constant 0 : index
    %c0_2 = arith.constant 0 : index
    %1 = vector.load %arg1[%c0_1, %c0_2] : memref<8x512xf32, #tpu.memory_space<vmem>>, vector<8x512xf32>
    %c17_i32 = arith.constant 17 : i32
    %2 = tpu.dynamic_rotate %1 by %c17_i32 dim 1 : vector<8x512xf32>, i32 -> vector<8x512xf32>
    %3 = vector.extract_strided_slice %0 {offsets = [0, 0], sizes = [1, 512], strides = [1, 1]} : vector<9x512xf32> to vector<1x512xf32>
    %4 = vector.broadcast %3 : vector<1x512xf32> to vector<8x512xf32>
    %5 = arith.mulf %2, %4 : vector<8x512xf32>
    %c16_i32 = arith.constant 16 : i32
    %6 = tpu.dynamic_rotate %1 by %c16_i32 dim 1 : vector<8x512xf32>, i32 -> vector<8x512xf32>
    %7 = vector.extract_strided_slice %0 {offsets = [1, 0], sizes = [1, 512], strides = [1, 1]} : vector<9x512xf32> to vector<1x512xf32>
    %8 = vector.broadcast %7 : vector<1x512xf32> to vector<8x512xf32>
    %9 = arith.mulf %6, %8 : vector<8x512xf32>
    %c15_i32 = arith.constant 15 : i32
    %10 = tpu.dynamic_rotate %1 by %c15_i32 dim 1 : vector<8x512xf32>, i32 -> vector<8x512xf32>
    %11 = vector.extract_strided_slice %0 {offsets = [2, 0], sizes = [1, 512], strides = [1, 1]} : vector<9x512xf32> to vector<1x512xf32>
    %12 = vector.broadcast %11 : vector<1x512xf32> to vector<8x512xf32>
    %13 = arith.mulf %10, %12 : vector<8x512xf32>
    %c1_i32 = arith.constant 1 : i32
    %14 = tpu.dynamic_rotate %1 by %c1_i32 dim 1 : vector<8x512xf32>, i32 -> vector<8x512xf32>
    %15 = vector.extract_strided_slice %0 {offsets = [3, 0], sizes = [1, 512], strides = [1, 1]} : vector<9x512xf32> to vector<1x512xf32>
    %16 = vector.broadcast %15 : vector<1x512xf32> to vector<8x512xf32>
    %17 = arith.mulf %14, %16 : vector<8x512xf32>
    %c511_i32 = arith.constant 511 : i32
    %18 = tpu.dynamic_rotate %1 by %c511_i32 dim 1 : vector<8x512xf32>, i32 -> vector<8x512xf32>
    %19 = vector.extract_strided_slice %0 {offsets = [5, 0], sizes = [1, 512], strides = [1, 1]} : vector<9x512xf32> to vector<1x512xf32>
    %20 = vector.broadcast %19 : vector<1x512xf32> to vector<8x512xf32>
    %21 = arith.mulf %18, %20 : vector<8x512xf32>
    %c497_i32 = arith.constant 497 : i32
    %22 = tpu.dynamic_rotate %1 by %c497_i32 dim 1 : vector<8x512xf32>, i32 -> vector<8x512xf32>
    %23 = vector.extract_strided_slice %0 {offsets = [6, 0], sizes = [1, 512], strides = [1, 1]} : vector<9x512xf32> to vector<1x512xf32>
    %24 = vector.broadcast %23 : vector<1x512xf32> to vector<8x512xf32>
    %25 = arith.mulf %22, %24 : vector<8x512xf32>
    %c496_i32 = arith.constant 496 : i32
    %26 = tpu.dynamic_rotate %1 by %c496_i32 dim 1 : vector<8x512xf32>, i32 -> vector<8x512xf32>
    %27 = vector.extract_strided_slice %0 {offsets = [7, 0], sizes = [1, 512], strides = [1, 1]} : vector<9x512xf32> to vector<1x512xf32>
    %28 = vector.broadcast %27 : vector<1x512xf32> to vector<8x512xf32>
    %29 = arith.mulf %26, %28 : vector<8x512xf32>
    %c495_i32 = arith.constant 495 : i32
    %30 = tpu.dynamic_rotate %1 by %c495_i32 dim 1 : vector<8x512xf32>, i32 -> vector<8x512xf32>
    %31 = vector.extract_strided_slice %0 {offsets = [8, 0], sizes = [1, 512], strides = [1, 1]} : vector<9x512xf32> to vector<1x512xf32>
    %32 = vector.broadcast %31 : vector<1x512xf32> to vector<8x512xf32>
    %33 = arith.mulf %30, %32 : vector<8x512xf32>
    %34 = tpu.concatenate %5, %9, %13, %17, %1, %21, %25, %29, %33 in 0 : vector<8x512xf32>, vector<8x512xf32>, vector<8x512xf32>, vector<8x512xf32>, vector<8x512xf32>, vector<8x512xf32>, vector<8x512xf32>, vector<8x512xf32>, vector<8x512xf32> -> vector<72x512xf32>
    %c0_3 = arith.constant 0 : index
    %c0_4 = arith.constant 0 : index
    %35 = vector.load %arg9[%c0_3, %c0_4] : memref<8x72xf32, #tpu.memory_space<vmem>>, vector<8x72xf32>
    %cst = arith.constant dense<0.000000e+00> : vector<8x512xf32>
    %36 = tpu.matmul %35, %34, %cst {dimension_numbers = #tpu.dot_dimension_numbers<[1], [0], [0], [1], [0, 0, 1, 1], [], []>} : vector<8x72xf32>, vector<72x512xf32>, vector<8x512xf32> -> vector<8x512xf32>
    %c0_5 = arith.constant 0 : index
    %c0_6 = arith.constant 0 : index
    %37 = vector.load %arg10[%c0_5, %c0_6] : memref<8x1xf32, #tpu.memory_space<vmem>>, vector<8x1xf32>
    %38 = vector.broadcast %37 : vector<8x1xf32> to vector<8x512xf32>
    %39 = arith.addf %36, %38 : vector<8x512xf32>
    %c0_7 = arith.constant 0 : index
    %c0_8 = arith.constant 0 : index
    %40 = vector.load %arg3[%c0_7, %c0_8] : memref<8x1xf32, #tpu.memory_space<vmem>>, vector<8x1xf32>
    %c0_9 = arith.constant 0 : index
    %c0_10 = arith.constant 0 : index
    %41 = vector.load %arg4[%c0_9, %c0_10] : memref<8x1xf32, #tpu.memory_space<vmem>>, vector<8x1xf32>
    %42 = vector.broadcast %40 : vector<8x1xf32> to vector<8x512xf32>
    %43 = arith.mulf %42, %5 : vector<8x512xf32>
    %44 = vector.broadcast %41 : vector<8x1xf32> to vector<8x512xf32>
    %45 = arith.addf %43, %44 : vector<8x512xf32>
    %cst_11 = arith.constant 0.000000e+00 : f32
    %46 = vector.broadcast %cst_11 : f32 to vector<8x512xf32>
    %47 = arith.maximumf %45, %46 : vector<8x512xf32>
    %48 = vector.extract_strided_slice %0 {offsets = [0, 0], sizes = [1, 512], strides = [1, 1]} : vector<9x512xf32> to vector<1x512xf32>
    %49 = vector.broadcast %48 : vector<1x512xf32> to vector<8x512xf32>
    %50 = arith.mulf %47, %49 : vector<8x512xf32>
    %51 = vector.broadcast %40 : vector<8x1xf32> to vector<8x512xf32>
    %52 = arith.mulf %51, %9 : vector<8x512xf32>
    %53 = vector.broadcast %41 : vector<8x1xf32> to vector<8x512xf32>
    %54 = arith.addf %52, %53 : vector<8x512xf32>
    %cst_12 = arith.constant 0.000000e+00 : f32
    %55 = vector.broadcast %cst_12 : f32 to vector<8x512xf32>
    %56 = arith.maximumf %54, %55 : vector<8x512xf32>
    %57 = vector.extract_strided_slice %0 {offsets = [1, 0], sizes = [1, 512], strides = [1, 1]} : vector<9x512xf32> to vector<1x512xf32>
    %58 = vector.broadcast %57 : vector<1x512xf32> to vector<8x512xf32>
    %59 = arith.mulf %56, %58 : vector<8x512xf32>
    %60 = vector.broadcast %40 : vector<8x1xf32> to vector<8x512xf32>
    %61 = arith.mulf %60, %13 : vector<8x512xf32>
    %62 = vector.broadcast %41 : vector<8x1xf32> to vector<8x512xf32>
    %63 = arith.addf %61, %62 : vector<8x512xf32>
    %cst_13 = arith.constant 0.000000e+00 : f32
    %64 = vector.broadcast %cst_13 : f32 to vector<8x512xf32>
    %65 = arith.maximumf %63, %64 : vector<8x512xf32>
    %66 = vector.extract_strided_slice %0 {offsets = [2, 0], sizes = [1, 512], strides = [1, 1]} : vector<9x512xf32> to vector<1x512xf32>
    %67 = vector.broadcast %66 : vector<1x512xf32> to vector<8x512xf32>
    %68 = arith.mulf %65, %67 : vector<8x512xf32>
    %69 = vector.broadcast %40 : vector<8x1xf32> to vector<8x512xf32>
    %70 = arith.mulf %69, %17 : vector<8x512xf32>
    %71 = vector.broadcast %41 : vector<8x1xf32> to vector<8x512xf32>
    %72 = arith.addf %70, %71 : vector<8x512xf32>
    %cst_14 = arith.constant 0.000000e+00 : f32
    %73 = vector.broadcast %cst_14 : f32 to vector<8x512xf32>
    %74 = arith.maximumf %72, %73 : vector<8x512xf32>
    %75 = vector.extract_strided_slice %0 {offsets = [3, 0], sizes = [1, 512], strides = [1, 1]} : vector<9x512xf32> to vector<1x512xf32>
    %76 = vector.broadcast %75 : vector<1x512xf32> to vector<8x512xf32>
    %77 = arith.mulf %74, %76 : vector<8x512xf32>
    %78 = vector.broadcast %40 : vector<8x1xf32> to vector<8x512xf32>
    %79 = arith.mulf %78, %1 : vector<8x512xf32>
    %80 = vector.broadcast %41 : vector<8x1xf32> to vector<8x512xf32>
    %81 = arith.addf %79, %80 : vector<8x512xf32>
    %cst_15 = arith.constant 0.000000e+00 : f32
    %82 = vector.broadcast %cst_15 : f32 to vector<8x512xf32>
    %83 = arith.maximumf %81, %82 : vector<8x512xf32>
    %84 = vector.broadcast %40 : vector<8x1xf32> to vector<8x512xf32>
    %85 = arith.mulf %84, %21 : vector<8x512xf32>
    %86 = vector.broadcast %41 : vector<8x1xf32> to vector<8x512xf32>
    %87 = arith.addf %85, %86 : vector<8x512xf32>
    %cst_16 = arith.constant 0.000000e+00 : f32
    %88 = vector.broadcast %cst_16 : f32 to vector<8x512xf32>
    %89 = arith.maximumf %87, %88 : vector<8x512xf32>
    %90 = vector.extract_strided_slice %0 {offsets = [5, 0], sizes = [1, 512], strides = [1, 1]} : vector<9x512xf32> to vector<1x512xf32>
    %91 = vector.broadcast %90 : vector<1x512xf32> to vector<8x512xf32>
    %92 = arith.mulf %89, %91 : vector<8x512xf32>
    %93 = vector.broadcast %40 : vector<8x1xf32> to vector<8x512xf32>
    %94 = arith.mulf %93, %25 : vector<8x512xf32>
    %95 = vector.broadcast %41 : vector<8x1xf32> to vector<8x512xf32>
    %96 = arith.addf %94, %95 : vector<8x512xf32>
    %cst_17 = arith.constant 0.000000e+00 : f32
    %97 = vector.broadcast %cst_17 : f32 to vector<8x512xf32>
    %98 = arith.maximumf %96, %97 : vector<8x512xf32>
    %99 = vector.extract_strided_slice %0 {offsets = [6, 0], sizes = [1, 512], strides = [1, 1]} : vector<9x512xf32> to vector<1x512xf32>
    %100 = vector.broadcast %99 : vector<1x512xf32> to vector<8x512xf32>
    %101 = arith.mulf %98, %100 : vector<8x512xf32>
    %102 = vector.broadcast %40 : vector<8x1xf32> to vector<8x512xf32>
    %103 = arith.mulf %102, %29 : vector<8x512xf32>
    %104 = vector.broadcast %41 : vector<8x1xf32> to vector<8x512xf32>
    %105 = arith.addf %103, %104 : vector<8x512xf32>
    %cst_18 = arith.constant 0.000000e+00 : f32
    %106 = vector.broadcast %cst_18 : f32 to vector<8x512xf32>
    %107 = arith.maximumf %105, %106 : vector<8x512xf32>
    %108 = vector.extract_strided_slice %0 {offsets = [7, 0], sizes = [1, 512], strides = [1, 1]} : vector<9x512xf32> to vector<1x512xf32>
    %109 = vector.broadcast %108 : vector<1x512xf32> to vector<8x512xf32>
    %110 = arith.mulf %107, %109 : vector<8x512xf32>
    %111 = vector.broadcast %40 : vector<8x1xf32> to vector<8x512xf32>
    %112 = arith.mulf %111, %33 : vector<8x512xf32>
    %113 = vector.broadcast %41 : vector<8x1xf32> to vector<8x512xf32>
    %114 = arith.addf %112, %113 : vector<8x512xf32>
    %cst_19 = arith.constant 0.000000e+00 : f32
    %115 = vector.broadcast %cst_19 : f32 to vector<8x512xf32>
    %116 = arith.maximumf %114, %115 : vector<8x512xf32>
    %117 = vector.extract_strided_slice %0 {offsets = [8, 0], sizes = [1, 512], strides = [1, 1]} : vector<9x512xf32> to vector<1x512xf32>
    %118 = vector.broadcast %117 : vector<1x512xf32> to vector<8x512xf32>
    %119 = arith.mulf %116, %118 : vector<8x512xf32>
    %120 = tpu.concatenate %50, %59, %68, %77, %83, %92, %101, %110, %119 in 0 : vector<8x512xf32>, vector<8x512xf32>, vector<8x512xf32>, vector<8x512xf32>, vector<8x512xf32>, vector<8x512xf32>, vector<8x512xf32>, vector<8x512xf32>, vector<8x512xf32> -> vector<72x512xf32>
    %c0_20 = arith.constant 0 : index
    %c0_21 = arith.constant 0 : index
    %121 = vector.load %arg5[%c0_20, %c0_21] : memref<8x72xf32, #tpu.memory_space<vmem>>, vector<8x72xf32>
    %cst_22 = arith.constant dense<0.000000e+00> : vector<8x512xf32>
    %122 = tpu.matmul %121, %120, %cst_22 {dimension_numbers = #tpu.dot_dimension_numbers<[1], [0], [0], [1], [0, 0, 1, 1], [], []>} : vector<8x72xf32>, vector<72x512xf32>, vector<8x512xf32> -> vector<8x512xf32>
    %c0_23 = arith.constant 0 : index
    %c0_24 = arith.constant 0 : index
    %123 = vector.load %arg6[%c0_23, %c0_24] : memref<8x1xf32, #tpu.memory_space<vmem>>, vector<8x1xf32>
    %124 = vector.broadcast %123 : vector<8x1xf32> to vector<8x512xf32>
    %125 = arith.addf %122, %124 : vector<8x512xf32>
    %cst_25 = arith.constant 0.000000e+00 : f32
    %126 = vector.broadcast %cst_25 : f32 to vector<8x512xf32>
    %127 = arith.maximumf %125, %126 : vector<8x512xf32>
    %c17_i32_26 = arith.constant 17 : i32
    %128 = tpu.dynamic_rotate %127 by %c17_i32_26 dim 1 : vector<8x512xf32>, i32 -> vector<8x512xf32>
    %129 = vector.extract_strided_slice %0 {offsets = [0, 0], sizes = [1, 512], strides = [1, 1]} : vector<9x512xf32> to vector<1x512xf32>
    %130 = vector.broadcast %129 : vector<1x512xf32> to vector<8x512xf32>
    %131 = arith.mulf %128, %130 : vector<8x512xf32>
    %c16_i32_27 = arith.constant 16 : i32
    %132 = tpu.dynamic_rotate %127 by %c16_i32_27 dim 1 : vector<8x512xf32>, i32 -> vector<8x512xf32>
    %133 = vector.extract_strided_slice %0 {offsets = [1, 0], sizes = [1, 512], strides = [1, 1]} : vector<9x512xf32> to vector<1x512xf32>
    %134 = vector.broadcast %133 : vector<1x512xf32> to vector<8x512xf32>
    %135 = arith.mulf %132, %134 : vector<8x512xf32>
    %c15_i32_28 = arith.constant 15 : i32
    %136 = tpu.dynamic_rotate %127 by %c15_i32_28 dim 1 : vector<8x512xf32>, i32 -> vector<8x512xf32>
    %137 = vector.extract_strided_slice %0 {offsets = [2, 0], sizes = [1, 512], strides = [1, 1]} : vector<9x512xf32> to vector<1x512xf32>
    %138 = vector.broadcast %137 : vector<1x512xf32> to vector<8x512xf32>
    %139 = arith.mulf %136, %138 : vector<8x512xf32>
    %c1_i32_29 = arith.constant 1 : i32
    %140 = tpu.dynamic_rotate %127 by %c1_i32_29 dim 1 : vector<8x512xf32>, i32 -> vector<8x512xf32>
    %141 = vector.extract_strided_slice %0 {offsets = [3, 0], sizes = [1, 512], strides = [1, 1]} : vector<9x512xf32> to vector<1x512xf32>
    %142 = vector.broadcast %141 : vector<1x512xf32> to vector<8x512xf32>
    %143 = arith.mulf %140, %142 : vector<8x512xf32>
    %c511_i32_30 = arith.constant 511 : i32
    %144 = tpu.dynamic_rotate %127 by %c511_i32_30 dim 1 : vector<8x512xf32>, i32 -> vector<8x512xf32>
    %145 = vector.extract_strided_slice %0 {offsets = [5, 0], sizes = [1, 512], strides = [1, 1]} : vector<9x512xf32> to vector<1x512xf32>
    %146 = vector.broadcast %145 : vector<1x512xf32> to vector<8x512xf32>
    %147 = arith.mulf %144, %146 : vector<8x512xf32>
    %c497_i32_31 = arith.constant 497 : i32
    %148 = tpu.dynamic_rotate %127 by %c497_i32_31 dim 1 : vector<8x512xf32>, i32 -> vector<8x512xf32>
    %149 = vector.extract_strided_slice %0 {offsets = [6, 0], sizes = [1, 512], strides = [1, 1]} : vector<9x512xf32> to vector<1x512xf32>
    %150 = vector.broadcast %149 : vector<1x512xf32> to vector<8x512xf32>
    %151 = arith.mulf %148, %150 : vector<8x512xf32>
    %c496_i32_32 = arith.constant 496 : i32
    %152 = tpu.dynamic_rotate %127 by %c496_i32_32 dim 1 : vector<8x512xf32>, i32 -> vector<8x512xf32>
    %153 = vector.extract_strided_slice %0 {offsets = [7, 0], sizes = [1, 512], strides = [1, 1]} : vector<9x512xf32> to vector<1x512xf32>
    %154 = vector.broadcast %153 : vector<1x512xf32> to vector<8x512xf32>
    %155 = arith.mulf %152, %154 : vector<8x512xf32>
    %c495_i32_33 = arith.constant 495 : i32
    %156 = tpu.dynamic_rotate %127 by %c495_i32_33 dim 1 : vector<8x512xf32>, i32 -> vector<8x512xf32>
    %157 = vector.extract_strided_slice %0 {offsets = [8, 0], sizes = [1, 512], strides = [1, 1]} : vector<9x512xf32> to vector<1x512xf32>
    %158 = vector.broadcast %157 : vector<1x512xf32> to vector<8x512xf32>
    %159 = arith.mulf %156, %158 : vector<8x512xf32>
    %160 = tpu.concatenate %131, %135, %139, %143, %127, %147, %151, %155, %159 in 0 : vector<8x512xf32>, vector<8x512xf32>, vector<8x512xf32>, vector<8x512xf32>, vector<8x512xf32>, vector<8x512xf32>, vector<8x512xf32>, vector<8x512xf32>, vector<8x512xf32> -> vector<72x512xf32>
    %c0_34 = arith.constant 0 : index
    %c0_35 = arith.constant 0 : index
    %161 = vector.load %arg7[%c0_34, %c0_35] : memref<8x72xf32, #tpu.memory_space<vmem>>, vector<8x72xf32>
    %cst_36 = arith.constant dense<0.000000e+00> : vector<8x512xf32>
    %162 = tpu.matmul %161, %160, %cst_36 {dimension_numbers = #tpu.dot_dimension_numbers<[1], [0], [0], [1], [0, 0, 1, 1], [], []>} : vector<8x72xf32>, vector<72x512xf32>, vector<8x512xf32> -> vector<8x512xf32>
    %c0_37 = arith.constant 0 : index
    %c0_38 = arith.constant 0 : index
    %163 = vector.load %arg8[%c0_37, %c0_38] : memref<8x1xf32, #tpu.memory_space<vmem>>, vector<8x1xf32>
    %164 = vector.broadcast %163 : vector<8x1xf32> to vector<8x512xf32>
    %165 = arith.addf %162, %164 : vector<8x512xf32>
    %166 = arith.addf %165, %39 : vector<8x512xf32>
    %c0_39 = arith.constant 0 : index
    %c0_40 = arith.constant 0 : index
    %167 = vector.load %arg11[%c0_39, %c0_40] : memref<8x512xf32, #tpu.memory_space<vmem>>, vector<8x512xf32>
    tpu.vector_store %arg11[%c0_39, %c0_40], %166 {strides = array<i32>} : memref<8x512xf32, #tpu.memory_space<vmem>>, vector<8x512xf32>,
    return
  }
  func.func @transform_0(%arg0: i32) -> (i32, i32) {
    %c0_i32 = arith.constant 0 : i32
    %c0_i32_0 = arith.constant 0 : i32
    return %c0_i32, %arg0 : i32, i32
  }
  func.func @transform_1(%arg0: i32) -> (i32, i32) {
    %c0_i32 = arith.constant 0 : i32
    %c0_i32_0 = arith.constant 0 : i32
    %c0_i32_1 = arith.constant 0 : i32
    return %c0_i32, %c0_i32_0 : i32, i32
  }
  func.func @transform_2(%arg0: i32) -> (i32, i32) {
    %c0_i32 = arith.constant 0 : i32
    %c0_i32_0 = arith.constant 0 : i32
    %c0_i32_1 = arith.constant 0 : i32
    return %c0_i32, %c0_i32_0 : i32, i32
  }
  func.func @transform_3(%arg0: i32) -> (i32, i32) {
    %c0_i32 = arith.constant 0 : i32
    %c0_i32_0 = arith.constant 0 : i32
    %c0_i32_1 = arith.constant 0 : i32
    return %c0_i32, %c0_i32_0 : i32, i32
  }
  func.func @transform_4(%arg0: i32) -> (i32, i32) {
    %c0_i32 = arith.constant 0 : i32
    %c0_i32_0 = arith.constant 0 : i32
    %c0_i32_1 = arith.constant 0 : i32
    return %c0_i32, %c0_i32_0 : i32, i32
  }
  func.func @transform_5(%arg0: i32) -> (i32, i32) {
    %c0_i32 = arith.constant 0 : i32
    %c0_i32_0 = arith.constant 0 : i32
    %c0_i32_1 = arith.constant 0 : i32
    return %c0_i32, %c0_i32_0 : i32, i32
  }
  func.func @transform_6(%arg0: i32) -> (i32, i32) {
    %c0_i32 = arith.constant 0 : i32
    %c0_i32_0 = arith.constant 0 : i32
    %c0_i32_1 = arith.constant 0 : i32
    return %c0_i32, %c0_i32_0 : i32, i32
  }
  func.func @transform_7(%arg0: i32) -> (i32, i32) {
    %c0_i32 = arith.constant 0 : i32
    %c0_i32_0 = arith.constant 0 : i32
    %c0_i32_1 = arith.constant 0 : i32
    return %c0_i32, %c0_i32_0 : i32, i32
  }
  func.func @transform_8(%arg0: i32) -> (i32, i32) {
    %c0_i32 = arith.constant 0 : i32
    %c0_i32_0 = arith.constant 0 : i32
    %c0_i32_1 = arith.constant 0 : i32
    return %c0_i32, %c0_i32_0 : i32, i32
  }
  func.func @transform_9(%arg0: i32) -> (i32, i32) {
    %c0_i32 = arith.constant 0 : i32
    %c0_i32_0 = arith.constant 0 : i32
    %c0_i32_1 = arith.constant 0 : i32
    return %c0_i32, %c0_i32_0 : i32, i32
  }
  func.func @transform_10(%arg0: i32) -> (i32, i32) {
    %c0_i32 = arith.constant 0 : i32
    %c0_i32_0 = arith.constant 0 : i32
    return %c0_i32, %arg0 : i32, i32
  }
}

</mosaic_0001>

<llo_original>
// kernel: tpu_custom_call.1
$region0: #{tpu_custom_call.1}
  #allocation0 [shape = 'u32[]', space=smem, size = 0x4, offset = 0x4, fixed_abs, tag = 'smem constant byte address 0x4 - core index']
  #allocation1 [shape = 'u32[144,128]{1,0:T(1,128)}', space=vmem, size = 0x12000, scoped, tag = 'internal scratch']
  %s0 = inlined_call_operand.vmem [shape: f32[8,512], index: 0, kind: input, shape index: {}]
  %s1 = inlined_call_operand.hbm [shape: f32[9,512], index: 1, kind: input, shape index: {}]
  %s2 = inlined_call_operand.vmem [shape: f32[8,1], index: 2, kind: input, shape index: {}]
  %s3 = inlined_call_operand.vmem [shape: f32[8,1], index: 3, kind: input, shape index: {}]
  %s4 = inlined_call_operand.vmem [shape: f32[8,72], index: 4, kind: input, shape index: {}]
  %s5 = inlined_call_operand.vmem [shape: f32[8,1], index: 5, kind: input, shape index: {}]
  %s6 = inlined_call_operand.vmem [shape: f32[8,72], index: 6, kind: input, shape index: {}]
  %s7 = inlined_call_operand.vmem [shape: f32[8,1], index: 7, kind: input, shape index: {}]
  %s8 = inlined_call_operand.vmem [shape: f32[8,72], index: 8, kind: input, shape index: {}]
  %s9 = inlined_call_operand.vmem [shape: f32[8,1], index: 9, kind: input, shape index: {}]
  %s10 = inlined_call_operand.hbm [shape: f32[8,512], index: 10, kind: output, shape index: {}]
  %s11 = sld [smem:[#allocation0]]
  $region54: #{tpu_custom_call.1} parent=0
    _
  %s13 = ssub.s32 1, %s11
  %s14 = scalar_select 0, %s13, %s11
  $region1: #{tpu_custom_call.1} parent=0
    #allocation2 [shape = 'u8[32768]{0}', space=vmem, size = 0x8000, scoped, tag = 'input window, operand 1, single buffered']
    #allocation3 [shape = 's32[1]{0}', space=sflag, size = 0x4, scoped, tag = 'scoped memory for tpu_custom_call.1']
    #allocation4 [shape = 's32[1]{0}', space=sflag, size = 0x4, scoped, tag = 'scoped memory for tpu_custom_call.1']
    #allocation5 [shape = 'u8[16384]{0}', space=vmem, size = 0x4000, scoped, tag = 'output window, operand 0, single buffered']
    %15 = vsyncpa [#allocation3], 0
    %16 = vsyncpa [#allocation4], 0
    // Predicated region
    $region2: #{tpu_custom_call.1} parent=1 // pred_check
      _
    $region3: #{tpu_custom_call.1} parent=1 // pred_check_branch
      %18 = sbr.rel (0) target = $region5
    $region4: #{tpu_custom_call.1} parent=1 // pred_region
      _
    $region5: #{tpu_custom_call.1} parent=1 // pred_fallthru
      _
    // Predicated region
    $region6: #{tpu_custom_call.1} parent=1 // pred_check
      _
    $region7: #{tpu_custom_call.1} parent=1 // pred_check_branch
      %20 = sbr.rel (0) target = $region9
    $region8: #{tpu_custom_call.1} parent=1 // pred_region
      %s22 = ssub.s32 1024, 1024
      %23 = vsyncadd [#allocation3], %s22
      %s24 = sshll.u32 [#allocation2], 4
      %s25 = int_to_ptr.vmem [resolvable:$true] %s24
      %30 = dma.hbm_to_vmem [thread:$0]  %s1, 1024, %s25, [#allocation3], 512, 512, 32
    $region9: #{tpu_custom_call.1} parent=1 // pred_fallthru
      _
    // Predicated region
    $region10: #{tpu_custom_call.1} parent=1 // pred_check
      _
    $region11: #{tpu_custom_call.1} parent=1 // pred_check_branch
      %32 = sbr.rel (0) target = $region13
    $region12: #{tpu_custom_call.1} parent=1 // pred_region
      _
    $region13: #{tpu_custom_call.1} parent=1 // pred_fallthru
      _
    // Predicated region
    $region14: #{tpu_custom_call.1} parent=1 // pred_check
      _
    $region15: #{tpu_custom_call.1} parent=1 // pred_check_branch
      %34 = sbr.rel (0) target = $region17
    $region16: #{tpu_custom_call.1} parent=1 // pred_region
      _
    $region17: #{tpu_custom_call.1} parent=1 // pred_fallthru
      _
    // Predicated region
    $region18: #{tpu_custom_call.1} parent=1 // pred_check
      _
    $region19: #{tpu_custom_call.1} parent=1 // pred_check_branch
      %36 = sbr.rel (0) target = $region21
    $region20: #{tpu_custom_call.1} parent=1 // pred_region
      _
    $region21: #{tpu_custom_call.1} parent=1 // pred_fallthru
      _
    // Predicated region
    $region22: #{tpu_custom_call.1} parent=1 // pred_check
      _
    $region23: #{tpu_custom_call.1} parent=1 // pred_check_branch
      %38 = sbr.rel (0) target = $region25
    $region24: #{tpu_custom_call.1} parent=1 // pred_region
      _
    $region25: #{tpu_custom_call.1} parent=1 // pred_fallthru
      _
    // Predicated region
    $region26: #{tpu_custom_call.1} parent=1 // pred_check
      _
    $region27: #{tpu_custom_call.1} parent=1 // pred_check_branch
      %40 = sbr.rel (0) target = $region29
    $region28: #{tpu_custom_call.1} parent=1 // pred_region
      _
    $region29: #{tpu_custom_call.1} parent=1 // pred_fallthru
      _
    // Predicated region
    $region30: #{tpu_custom_call.1} parent=1 // pred_check
      _
    $region31: #{tpu_custom_call.1} parent=1 // pred_check_branch
      %42 = sbr.rel (0) target = $region33
    $region32: #{tpu_custom_call.1} parent=1 // pred_region
      _
    $region33: #{tpu_custom_call.1} parent=1 // pred_fallthru
      _
    // Predicated region
    $region34: #{tpu_custom_call.1} parent=1 // pred_check
      _
    $region35: #{tpu_custom_call.1} parent=1 // pred_check_branch
      %44 = sbr.rel (0) target = $region37
    $region36: #{tpu_custom_call.1} parent=1 // pred_region
      _
    $region37: #{tpu_custom_call.1} parent=1 // pred_fallthru
      _
    // Predicated region
    $region38: #{tpu_custom_call.1} parent=1 // pred_check
      _
    $region39: #{tpu_custom_call.1} parent=1 // pred_check_branch
      %46 = sbr.rel (0) target = $region41
    $region40: #{tpu_custom_call.1} parent=1 // pred_region
      _
    $region41: #{tpu_custom_call.1} parent=1 // pred_fallthru
      _
    // Predicated region
    $region42: #{tpu_custom_call.1} parent=1 // pred_check
      _
    $region43: #{tpu_custom_call.1} parent=1 // pred_check_branch
      %48 = sbr.rel (0) target = $region45
    $region44: #{tpu_custom_call.1} parent=1 // pred_region
      %49 = dma.done [#allocation3], 1024
    $region45: #{tpu_custom_call.1} parent=1 // pred_fallthru
      _
    %v50 = vld [vmem:[#allocation2] sm:$0xff]
    %v51 = vld [vmem:[#allocation2 + $0x8] sm:$0xff]
    %v52 = vld [vmem:[#allocation2 + $0x10] sm:$0xff]
    %v53 = vld [vmem:[#allocation2 + $0x18] sm:$0xff]
    %v54 = vld [vmem:[#allocation2 + $0x20] sm:$0x1]
    %v55 = vld [vmem:[#allocation2 + $0x28] sm:$0x1]
    %v56 = vld [vmem:[#allocation2 + $0x30] sm:$0x1]
    %v57 = vld [vmem:[#allocation2 + $0x38] sm:$0x1]
    %v58 = vld [vmem:[%s0] sm:$0xff]
    %v59 = vld [vmem:[%s0 + $0x8] sm:$0xff]
    %v60 = vld [vmem:[%s0 + $0x10] sm:$0xff]
    %v61 = vld [vmem:[%s0 + $0x18] sm:$0xff]
    %62 = vrot.lane.b32.xlu0 %v58, 17
    %v63 = vpop.permute.xlu0 %62
    %64 = vrot.lane.b32.xlu0 %v59, 17
    %v65 = vpop.permute.xlu0 %64
    %66 = vrot.lane.b32.xlu0 %v60, 17
    %v67 = vpop.permute.xlu0 %66
    %68 = vrot.lane.b32.xlu0 %v61, 17
    %v69 = vpop.permute.xlu0 %68
    %v70 = vlaneseq
    %v71 = vand.u32 %v70, 127
    %vm72 = vcmp.lt.s32.totalorder %v71, 17
    %v73 = vsel %vm72, %v67, %v69
    %v74 = vsel %vm72, %v65, %v67
    %v75 = vsel %vm72, %v63, %v65
    %v76 = vsel %vm72, %v69, %v63
    %v77 = vlaneseq
    %v78 = vshrl.u32 %v77, 7
    %v79 = vsub.s32 0, %v78
    %v80 = vrot.slane %v50, %v79
    %v81 = vlaneseq
    %v82 = vshrl.u32 %v81, 7
    %v83 = vsub.s32 0, %v82
    %v84 = vrot.slane %v51, %v83
    %v85 = vlaneseq
    %v86 = vshrl.u32 %v85, 7
    %v87 = vsub.s32 0, %v86
    %v88 = vrot.slane %v52, %v87
    %v89 = vlaneseq
    %v90 = vshrl.u32 %v89, 7
    %v91 = vsub.s32 0, %v90
    %v92 = vrot.slane %v53, %v91
    %v93 = vmul.f32 %v76, %v80
    %v94 = vmul.f32 %v75, %v84
    %v95 = vmul.f32 %v74, %v88
    %v96 = vmul.f32 %v73, %v92
    %97 = vrot.lane.b32.xlu0 %v58, 16
    %v98 = vpop.permute.xlu0 %97
    %99 = vrot.lane.b32.xlu0 %v59, 16
    %v100 = vpop.permute.xlu0 %99
    %101 = vrot.lane.b32.xlu0 %v60, 16
    %v102 = vpop.permute.xlu0 %101
    %103 = vrot.lane.b32.xlu0 %v61, 16
    %v104 = vpop.permute.xlu0 %103
    %vm105 = vcmp.lt.s32.totalorder %v71, 16
    %v106 = vsel %vm105, %v102, %v104
    %v107 = vsel %vm105, %v100, %v102
    %v108 = vsel %vm105, %v98, %v100
    %v109 = vsel %vm105, %v104, %v98
    %v110 = vlaneseq
    %v111 = vshrl.u32 %v110, 7
    %v112 = vsub.s32 1, %v111
    %v113 = vrot.slane %v50, %v112
    %v114 = vlaneseq
    %v115 = vshrl.u32 %v114, 7
    %v116 = vsub.s32 1, %v115
    %v117 = vrot.slane %v51, %v116
    %v118 = vlaneseq
    %v119 = vshrl.u32 %v118, 7
    %v120 = vsub.s32 1, %v119
    %v121 = vrot.slane %v52, %v120
    %v122 = vlaneseq
    %v123 = vshrl.u32 %v122, 7
    %v124 = vsub.s32 1, %v123
    %v125 = vrot.slane %v53, %v124
    %v126 = vmul.f32 %v109, %v113
    %v127 = vmul.f32 %v108, %v117
    %v128 = vmul.f32 %v107, %v121
    %v129 = vmul.f32 %v106, %v125
    %130 = vrot.lane.b32.xlu0 %v58, 15
    %v131 = vpop.permute.xlu0 %130
    %132 = vrot.lane.b32.xlu0 %v59, 15
    %v133 = vpop.permute.xlu0 %132
    %134 = vrot.lane.b32.xlu0 %v60, 15
    %v135 = vpop.permute.xlu0 %134
    %136 = vrot.lane.b32.xlu0 %v61, 15
    %v137 = vpop.permute.xlu0 %136
    %vm138 = vcmp.lt.s32.totalorder %v71, 15
    %v139 = vsel %vm138, %v135, %v137
    %v140 = vsel %vm138, %v133, %v135
    %v141 = vsel %vm138, %v131, %v133
    %v142 = vsel %vm138, %v137, %v131
    %v143 = vlaneseq
    %v144 = vshrl.u32 %v143, 7
    %v145 = vsub.s32 2, %v144
    %v146 = vrot.slane %v50, %v145
    %v147 = vlaneseq
    %v148 = vshrl.u32 %v147, 7
    %v149 = vsub.s32 2, %v148
    %v150 = vrot.slane %v51, %v149
    %v151 = vlaneseq
    %v152 = vshrl.u32 %v151, 7
    %v153 = vsub.s32 2, %v152
    %v154 = vrot.slane %v52, %v153
    %v155 = vlaneseq
    %v156 = vshrl.u32 %v155, 7
    %v157 = vsub.s32 2, %v156
    %v158 = vrot.slane %v53, %v157
    %v159 = vmul.f32 %v142, %v146
    %v160 = vmul.f32 %v141, %v150
    %v161 = vmul.f32 %v140, %v154
    %v162 = vmul.f32 %v139, %v158
    %163 = vrot.lane.b32.xlu0 %v58, 1
    %v164 = vpop.permute.xlu0 %163
    %165 = vrot.lane.b32.xlu0 %v59, 1
    %v166 = vpop.permute.xlu0 %165
    %167 = vrot.lane.b32.xlu0 %v60, 1
    %v168 = vpop.permute.xlu0 %167
    %169 = vrot.lane.b32.xlu0 %v61, 1
    %v170 = vpop.permute.xlu0 %169
    %vm171 = vcmp.lt.s32.totalorder %v71, 1
    %v172 = vsel %vm171, %v168, %v170
    %v173 = vsel %vm171, %v166, %v168
    %v174 = vsel %vm171, %v164, %v166
    %v175 = vsel %vm171, %v170, %v164
    %v176 = vlaneseq
    %v177 = vshrl.u32 %v176, 7
    %v178 = vsub.s32 3, %v177
    %v179 = vrot.slane %v50, %v178
    %v180 = vlaneseq
    %v181 = vshrl.u32 %v180, 7
    %v182 = vsub.s32 3, %v181
    %v183 = vrot.slane %v51, %v182
    %v184 = vlaneseq
    %v185 = vshrl.u32 %v184, 7
    %v186 = vsub.s32 3, %v185
    %v187 = vrot.slane %v52, %v186
    %v188 = vlaneseq
    %v189 = vshrl.u32 %v188, 7
    %v190 = vsub.s32 3, %v189
    %v191 = vrot.slane %v53, %v190
    %v192 = vmul.f32 %v175, %v179
    %v193 = vmul.f32 %v174, %v183
    %v194 = vmul.f32 %v173, %v187
    %v195 = vmul.f32 %v172, %v191
    %196 = vrot.lane.b32.xlu0 %v58, 127
    %v197 = vpop.permute.xlu0 %196
    %198 = vrot.lane.b32.xlu0 %v59, 127
    %v199 = vpop.permute.xlu0 %198
    %200 = vrot.lane.b32.xlu0 %v60, 127
    %v201 = vpop.permute.xlu0 %200
    %202 = vrot.lane.b32.xlu0 %v61, 127
    %v203 = vpop.permute.xlu0 %202
    %vm204 = vcmp.lt.s32.totalorder %v71, 127
    %v205 = vsel %vm204, %v201, %v203
    %v206 = vsel %vm204, %v199, %v201
    %v207 = vsel %vm204, %v197, %v199
    %v208 = vsel %vm204, %v203, %v197
    %v209 = vlaneseq
    %v210 = vshrl.u32 %v209, 7
    %v211 = vsub.s32 5, %v210
    %v212 = vrot.slane %v50, %v211
    %v213 = vlaneseq
    %v214 = vshrl.u32 %v213, 7
    %v215 = vsub.s32 5, %v214
    %v216 = vrot.slane %v51, %v215
    %v217 = vlaneseq
    %v218 = vshrl.u32 %v217, 7
    %v219 = vsub.s32 5, %v218
    %v220 = vrot.slane %v52, %v219
    %v221 = vlaneseq
    %v222 = vshrl.u32 %v221, 7
    %v223 = vsub.s32 5, %v222
    %v224 = vrot.slane %v53, %v223
    %v225 = vmul.f32 %v207, %v212
    %v226 = vmul.f32 %v206, %v216
    %v227 = vmul.f32 %v205, %v220
    %v228 = vmul.f32 %v208, %v224
    %229 = vrot.lane.b32.xlu0 %v58, 113
    %v230 = vpop.permute.xlu0 %229
    %231 = vrot.lane.b32.xlu0 %v59, 113
    %v232 = vpop.permute.xlu0 %231
    %233 = vrot.lane.b32.xlu0 %v60, 113
    %v234 = vpop.permute.xlu0 %233
    %235 = vrot.lane.b32.xlu0 %v61, 113
    %v236 = vpop.permute.xlu0 %235
    %vm237 = vcmp.lt.s32.totalorder %v71, 113
    %v238 = vsel %vm237, %v234, %v236
    %v239 = vsel %vm237, %v232, %v234
    %v240 = vsel %vm237, %v230, %v232
    %v241 = vsel %vm237, %v236, %v230
    %v242 = vlaneseq
    %v243 = vshrl.u32 %v242, 7
    %v244 = vsub.s32 6, %v243
    %v245 = vrot.slane %v50, %v244
    %v246 = vlaneseq
    %v247 = vshrl.u32 %v246, 7
    %v248 = vsub.s32 6, %v247
    %v249 = vrot.slane %v51, %v248
    %v250 = vlaneseq
    %v251 = vshrl.u32 %v250, 7
    %v252 = vsub.s32 6, %v251
    %v253 = vrot.slane %v52, %v252
    %v254 = vlaneseq
    %v255 = vshrl.u32 %v254, 7
    %v256 = vsub.s32 6, %v255
    %v257 = vrot.slane %v53, %v256
    %v258 = vmul.f32 %v240, %v245
    %v259 = vmul.f32 %v239, %v249
    %v260 = vmul.f32 %v238, %v253
    %v261 = vmul.f32 %v241, %v257
    %262 = vrot.lane.b32.xlu0 %v58, 112
    %v263 = vpop.permute.xlu0 %262
    %264 = vrot.lane.b32.xlu0 %v59, 112
    %v265 = vpop.permute.xlu0 %264
    %266 = vrot.lane.b32.xlu0 %v60, 112
    %v267 = vpop.permute.xlu0 %266
    %268 = vrot.lane.b32.xlu0 %v61, 112
    %v269 = vpop.permute.xlu0 %268
    %vm270 = vcmp.lt.s32.totalorder %v71, 112
    %v271 = vsel %vm270, %v267, %v269
    %v272 = vsel %vm270, %v265, %v267
    %v273 = vsel %vm270, %v263, %v265
    %v274 = vsel %vm270, %v269, %v263
    %v275 = vlaneseq
    %v276 = vshrl.u32 %v275, 7
    %v277 = vsub.s32 7, %v276
    %v278 = vrot.slane %v50, %v277
    %v279 = vlaneseq
    %v280 = vshrl.u32 %v279, 7
    %v281 = vsub.s32 7, %v280
    %v282 = vrot.slane %v51, %v281
    %v283 = vlaneseq
    %v284 = vshrl.u32 %v283, 7
    %v285 = vsub.s32 7, %v284
    %v286 = vrot.slane %v52, %v285
    %v287 = vlaneseq
    %v288 = vshrl.u32 %v287, 7
    %v289 = vsub.s32 7, %v288
    %v290 = vrot.slane %v53, %v289
    %v291 = vmul.f32 %v273, %v278
    %v292 = vmul.f32 %v272, %v282
    %v293 = vmul.f32 %v271, %v286
    %v294 = vmul.f32 %v274, %v290
    %295 = vrot.lane.b32.xlu0 %v58, 111
    %v296 = vpop.permute.xlu0 %295
    %297 = vrot.lane.b32.xlu0 %v59, 111
    %v298 = vpop.permute.xlu0 %297
    %299 = vrot.lane.b32.xlu0 %v60, 111
    %v300 = vpop.permute.xlu0 %299
    %301 = vrot.lane.b32.xlu0 %v61, 111
    %v302 = vpop.permute.xlu0 %301
    %vm303 = vcmp.lt.s32.totalorder %v71, 111
    %v304 = vsel %vm303, %v300, %v302
    %v305 = vsel %vm303, %v298, %v300
    %v306 = vsel %vm303, %v296, %v298
    %v307 = vsel %vm303, %v302, %v296
    %v308 = vlaneseq
    %v309 = vshrl.u32 %v308, 7
    %v310 = vsub.s32 0, %v309
    %v311 = vrot.slane %v54, %v310
    %v312 = vlaneseq
    %v313 = vshrl.u32 %v312, 7
    %v314 = vsub.s32 0, %v313
    %v315 = vrot.slane %v55, %v314
    %v316 = vlaneseq
    %v317 = vshrl.u32 %v316, 7
    %v318 = vsub.s32 0, %v317
    %v319 = vrot.slane %v56, %v318
    %v320 = vlaneseq
    %v321 = vshrl.u32 %v320, 7
    %v322 = vsub.s32 0, %v321
    %v323 = vrot.slane %v57, %v322
    %v324 = vmul.f32 %v306, %v311
    %v325 = vmul.f32 %v305, %v315
    %v326 = vmul.f32 %v304, %v319
    %v327 = vmul.f32 %v307, %v323
    %v328 = vld [vmem:[%s8] sm:$0xff]
    %v329 = vld [vmem:[%s9] sm:$0xff]
    %331 = vset.pattern.permute.xlu0 0
    %332 = vperm.xlu0 %331, %v329
    %v333 = vpop.permute.xlu0 %332
    %vm335 = vcmask 588800
    %v337 = vsel %vm335, %v328, 0
    %339 = vmatprep.subr.mxu0 %v94
    %340 = vmatpush1.msra.mxu0 %v93
    %341 = vmatprep.subr.mxu0 %v127
    %342 = vmatpush1.msra.mxu0 %v126
    %343 = vmatprep.subr.mxu0 %v160
    %344 = vmatpush1.msra.mxu0 %v159
    %345 = vmatprep.subr.mxu0 %v193
    %346 = vmatpush1.msra.mxu0 %v192
    %347 = vmatprep.subr.mxu0 %v59
    %348 = vmatpush1.msra.mxu0 %v58
    %349 = vmatprep.subr.mxu0 %v226
    %350 = vmatpush1.msra.mxu0 %v225
    %351 = vmatprep.subr.mxu0 %v259
    %352 = vmatpush1.msra.mxu0 %v258
    %353 = vmatprep.subr.mxu0 %v292
    %354 = vmatpush1.msra.mxu0 %v291
    %355 = vmatprep.subr.mxu0 %v325
    %356 = vmatpush1.msra.mxu0 %v324
    %357 = vmatprep.subr.mxu0 0.0
    %358 = vmatpush1.msra.mxu0 0.0
    %359 = vmatprep.subr.mxu0 0.0
    %360 = vmatpush1.msra.mxu0 0.0
    %361 = vmatprep.subr.mxu0 0.0
    %362 = vmatpush1.msra.mxu0 0.0
    %363 = vmatprep.subr.mxu0 0.0
    %364 = vmatpush1.msra.mxu0 0.0
    %365 = vmatprep.subr.mxu0 0.0
    %366 = vmatpush1.msra.mxu0 0.0
    %367 = vmatprep.subr.mxu0 0.0
    %368 = vmatpush1.msra.mxu0 0.0
    %369 = vmatprep.subr.mxu0 0.0
    %370 = vmatpush1.msra.mxu0 0.0
    %371 = vmatprep.subr.mxu0 0.0
    %372 = vmatpush1.msra.mxu0 0.0
    %373 = vmatprep.subr.mxu0 0.0
    %374 = vmatpush1.msra.mxu0 0.0
    %375 = vmatprep.subr.mxu0 0.0
    %376 = vmatpush1.msra.mxu0 0.0
    %377 = vmatprep.subr.mxu0 0.0
    %378 = vmatpush1.msra.mxu0 0.0
    %379 = vmatprep.subr.mxu0 0.0
    %380 = vmatpush1.msra.mxu0 0.0
    %381 = vmatprep.subr.mxu0 0.0
    %382 = vmatpush1.msra.mxu0 0.0
    %383 = vmatprep.subr.mxu0 0.0
    %384 = vmatpush1.msra.mxu0 0.0
    %385 = vmatprep.subr.mxu0 0.0
    %386 = vmatpush1.msra.mxu0 0.0
    %387 = vmatprep.subr.mxu0 0.0
    %388 = vmatpush1.msra.mxu0 0.0
    %389 = vmatprep.subr.mxu0 0.0
    %390 = vmatpush1.msra.mxu0 0.0
    %391 = vmatprep.subr.mxu0 0.0
    %392 = vmatpush1.msra.mxu0 0.0
    %393 = vmatprep.subr.mxu0 0.0
    %394 = vmatpush1.msra.mxu0 0.0
    %395 = vmatprep.subr.mxu0 0.0
    %396 = vmatpush1.msra.mxu0 0.0
    %397 = vmatprep.subr.mxu0 0.0
    %398 = vmatpush1.msra.mxu0 0.0
    %399 = vmatprep.subr.mxu0 0.0
    %400 = vmatpush1.msra.mxu0 0.0
    %401 = vmatprep.subr.mxu0 0.0
    %402 = vmatpush1.msra.mxu0 0.0
    %403 = vmatprep.mubr.f32.mxu0 0.0
    %404 = vmatmul.mubr.f32.gmra.mrb[0].mxu0 %v337
    %v405 = vpop.f32.mrb[0].mxu0
    %v406 = vadd.f32 %v333, %v405
    %v407 = vpop.f32.mrb[0].mxu0
    %v408 = vadd.f32 %v333, %v407
    %409 = vdwg.mxu0
    %410 = vmatprep.subr.mxu0 %v96
    %411 = vmatpush1.msra.mxu0 %v95
    %412 = vmatprep.subr.mxu0 %v129
    %413 = vmatpush1.msra.mxu0 %v128
    %414 = vmatprep.subr.mxu0 %v162
    %415 = vmatpush1.msra.mxu0 %v161
    %416 = vmatprep.subr.mxu0 %v195
    %417 = vmatpush1.msra.mxu0 %v194
    %418 = vmatprep.subr.mxu0 %v61
    %419 = vmatpush1.msra.mxu0 %v60
    %420 = vmatprep.subr.mxu0 %v228
    %421 = vmatpush1.msra.mxu0 %v227
    %422 = vmatprep.subr.mxu0 %v261
    %423 = vmatpush1.msra.mxu0 %v260
    %424 = vmatprep.subr.mxu0 %v294
    %425 = vmatpush1.msra.mxu0 %v293
    %426 = vmatprep.subr.mxu0 %v327
    %427 = vmatpush1.msra.mxu0 %v326
    %428 = vmatprep.subr.mxu0 0.0
    %429 = vmatpush1.msra.mxu0 0.0
    %430 = vmatprep.subr.mxu0 0.0
    %431 = vmatpush1.msra.mxu0 0.0
    %432 = vmatprep.subr.mxu0 0.0
    %433 = vmatpush1.msra.mxu0 0.0
    %434 = vmatprep.subr.mxu0 0.0
    %435 = vmatpush1.msra.mxu0 0.0
    %436 = vmatprep.subr.mxu0 0.0
    %437 = vmatpush1.msra.mxu0 0.0
    %438 = vmatprep.subr.mxu0 0.0
    %439 = vmatpush1.msra.mxu0 0.0
    %440 = vmatprep.subr.mxu0 0.0
    %441 = vmatpush1.msra.mxu0 0.0
    %442 = vmatprep.subr.mxu0 0.0
    %443 = vmatpush1.msra.mxu0 0.0
    %444 = vmatprep.subr.mxu0 0.0
    %445 = vmatpush1.msra.mxu0 0.0
    %446 = vmatprep.subr.mxu0 0.0
    %447 = vmatpush1.msra.mxu0 0.0
    %448 = vmatprep.subr.mxu0 0.0
    %449 = vmatpush1.msra.mxu0 0.0
    %450 = vmatprep.subr.mxu0 0.0
    %451 = vmatpush1.msra.mxu0 0.0
    %452 = vmatprep.subr.mxu0 0.0
    %453 = vmatpush1.msra.mxu0 0.0
    %454 = vmatprep.subr.mxu0 0.0
    %455 = vmatpush1.msra.mxu0 0.0
    %456 = vmatprep.subr.mxu0 0.0
    %457 = vmatpush1.msra.mxu0 0.0
    %458 = vmatprep.subr.mxu0 0.0
    %459 = vmatpush1.msra.mxu0 0.0
    %460 = vmatprep.subr.mxu0 0.0
    %461 = vmatpush1.msra.mxu0 0.0
    %462 = vmatprep.subr.mxu0 0.0
    %463 = vmatpush1.msra.mxu0 0.0
    %464 = vmatprep.subr.mxu0 0.0
    %465 = vmatpush1.msra.mxu0 0.0
    %466 = vmatprep.subr.mxu0 0.0
    %467 = vmatpush1.msra.mxu0 0.0
    %468 = vmatprep.subr.mxu0 0.0
    %469 = vmatpush1.msra.mxu0 0.0
    %470 = vmatprep.subr.mxu0 0.0
    %471 = vmatpush1.msra.mxu0 0.0
    %472 = vmatprep.subr.mxu0 0.0
    %473 = vmatpush1.msra.mxu0 0.0
    %474 = vmatprep.mubr.f32.mxu0 0.0
    %475 = vmatmul.mubr.f32.gmra.mrb[0].mxu0 %v337
    %v476 = vpop.f32.mrb[0].mxu0
    %v477 = vadd.f32 %v333, %v476
    %v478 = vpop.f32.mrb[0].mxu0
    %v479 = vadd.f32 %v333, %v478
    %480 = vdwg.mxu0
    %v481 = vld [vmem:[%s2] sm:$0xff]
    %v482 = vld [vmem:[%s3] sm:$0xff]
    %484 = vset.pattern.permute.xlu0 0
    %485 = vperm.xlu0 %484, %v481
    %v486 = vpop.permute.xlu0 %485
    %v488 = vmul.f32 %v486, %v93
    %v489 = vmul.f32 %v486, %v94
    %v490 = vmul.f32 %v486, %v95
    %v491 = vmul.f32 %v486, %v96
    %493 = vset.pattern.permute.xlu0 0
    %494 = vperm.xlu0 %493, %v482
    %v495 = vpop.permute.xlu0 %494
    %v497 = vadd.f32 %v488, %v495
    %v498 = vadd.f32 %v489, %v495
    %v499 = vadd.f32 %v490, %v495
    %v500 = vadd.f32 %v491, %v495
    %v501 = vmax.f32 %v497, 0.0
    %v502 = vmax.f32 %v498, 0.0
    %v503 = vmax.f32 %v499, 0.0
    %v504 = vmax.f32 %v500, 0.0
    %v505 = vmul.f32 %v501, %v80
    %v506 = vmul.f32 %v502, %v84
    %v507 = vmul.f32 %v503, %v88
    %v508 = vmul.f32 %v504, %v92
    %v509 = vmul.f32 %v486, %v126
    %v510 = vmul.f32 %v486, %v127
    %v511 = vmul.f32 %v486, %v128
    %v512 = vmul.f32 %v486, %v129
    %v513 = vadd.f32 %v509, %v495
    %v514 = vadd.f32 %v510, %v495
    %v515 = vadd.f32 %v511, %v495
    %v516 = vadd.f32 %v512, %v495
    %v517 = vmax.f32 %v513, 0.0
    %v518 = vmax.f32 %v514, 0.0
    %v519 = vmax.f32 %v515, 0.0
    %v520 = vmax.f32 %v516, 0.0
    %v521 = vmul.f32 %v517, %v113
    %v522 = vmul.f32 %v518, %v117
    %v523 = vmul.f32 %v519, %v121
    %v524 = vmul.f32 %v520, %v125
    %v525 = vmul.f32 %v486, %v159
    %v526 = vmul.f32 %v486, %v160
    %v527 = vmul.f32 %v486, %v161
    %v528 = vmul.f32 %v486, %v162
    %v529 = vadd.f32 %v525, %v495
    %v530 = vadd.f32 %v526, %v495
    %v531 = vadd.f32 %v527, %v495
    %v532 = vadd.f32 %v528, %v495
    %v533 = vmax.f32 %v529, 0.0
    %v534 = vmax.f32 %v530, 0.0
    %v535 = vmax.f32 %v531, 0.0
    %v536 = vmax.f32 %v532, 0.0
    %v537 = vmul.f32 %v533, %v146
    %v538 = vmul.f32 %v534, %v150
    %v539 = vmul.f32 %v535, %v154
    %v540 = vmul.f32 %v536, %v158
    %v541 = vmul.f32 %v486, %v192
    %v542 = vmul.f32 %v486, %v193
    %v543 = vmul.f32 %v486, %v194
    %v544 = vmul.f32 %v486, %v195
    %v545 = vadd.f32 %v541, %v495
    %v546 = vadd.f32 %v542, %v495
    %v547 = vadd.f32 %v543, %v495
    %v548 = vadd.f32 %v544, %v495
    %v549 = vmax.f32 %v545, 0.0
    %v550 = vmax.f32 %v546, 0.0
    %v551 = vmax.f32 %v547, 0.0
    %v552 = vmax.f32 %v548, 0.0
    %v553 = vmul.f32 %v549, %v179
    %v554 = vmul.f32 %v550, %v183
    %v555 = vmul.f32 %v551, %v187
    %v556 = vmul.f32 %v552, %v191
    %v557 = vmul.f32 %v486, %v58
    %v558 = vmul.f32 %v486, %v59
    %v559 = vmul.f32 %v486, %v60
    %v560 = vmul.f32 %v486, %v61
    %v561 = vadd.f32 %v557, %v495
    %v562 = vadd.f32 %v558, %v495
    %v563 = vadd.f32 %v559, %v495
    %v564 = vadd.f32 %v560, %v495
    %v565 = vmax.f32 %v561, 0.0
    %v566 = vmax.f32 %v562, 0.0
    %v567 = vmax.f32 %v563, 0.0
    %v568 = vmax.f32 %v564, 0.0
    %v569 = vmul.f32 %v486, %v225
    %v570 = vmul.f32 %v486, %v226
    %v571 = vmul.f32 %v486, %v227
    %v572 = vmul.f32 %v486, %v228
    %v573 = vadd.f32 %v569, %v495
    %v574 = vadd.f32 %v570, %v495
    %v575 = vadd.f32 %v571, %v495
    %v576 = vadd.f32 %v572, %v495
    %v577 = vmax.f32 %v573, 0.0
    %v578 = vmax.f32 %v574, 0.0
    %v579 = vmax.f32 %v575, 0.0
    %v580 = vmax.f32 %v576, 0.0
    %v581 = vmul.f32 %v577, %v212
    %v582 = vmul.f32 %v578, %v216
    %v583 = vmul.f32 %v579, %v220
    %v584 = vmul.f32 %v580, %v224
    %v585 = vmul.f32 %v486, %v258
    %v586 = vmul.f32 %v486, %v259
    %v587 = vmul.f32 %v486, %v260
    %v588 = vmul.f32 %v486, %v261
    %v589 = vadd.f32 %v585, %v495
    %v590 = vadd.f32 %v586, %v495
    %v591 = vadd.f32 %v587, %v495
    %v592 = vadd.f32 %v588, %v495
    %v593 = vmax.f32 %v589, 0.0
    %v594 = vmax.f32 %v590, 0.0
    %v595 = vmax.f32 %v591, 0.0
    %v596 = vmax.f32 %v592, 0.0
    %v597 = vmul.f32 %v593, %v245
    %v598 = vmul.f32 %v594, %v249
    %v599 = vmul.f32 %v595, %v253
    %v600 = vmul.f32 %v596, %v257
    %v601 = vmul.f32 %v486, %v291
    %v602 = vmul.f32 %v486, %v292
    %v603 = vmul.f32 %v486, %v293
    %v604 = vmul.f32 %v486, %v294
    %v605 = vadd.f32 %v601, %v495
    %v606 = vadd.f32 %v602, %v495
    %v607 = vadd.f32 %v603, %v495
    %v608 = vadd.f32 %v604, %v495
    %v609 = vmax.f32 %v605, 0.0
    %v610 = vmax.f32 %v606, 0.0
    %v611 = vmax.f32 %v607, 0.0
    %v612 = vmax.f32 %v608, 0.0
    %v613 = vmul.f32 %v609, %v278
    %v614 = vmul.f32 %v610, %v282
    %v615 = vmul.f32 %v611, %v286
    %v616 = vmul.f32 %v612, %v290
    %v617 = vmul.f32 %v486, %v324
    %v618 = vmul.f32 %v486, %v325
    %v619 = vmul.f32 %v486, %v326
    %v620 = vmul.f32 %v486, %v327
    %v621 = vadd.f32 %v617, %v495
    %v622 = vadd.f32 %v618, %v495
    %v623 = vadd.f32 %v619, %v495
    %v624 = vadd.f32 %v620, %v495
    %v625 = vmax.f32 %v621, 0.0
    %v626 = vmax.f32 %v622, 0.0
    %v627 = vmax.f32 %v623, 0.0
    %v628 = vmax.f32 %v624, 0.0
    %v629 = vmul.f32 %v625, %v311
    %v630 = vmul.f32 %v626, %v315
    %v631 = vmul.f32 %v627, %v319
    %v632 = vmul.f32 %v628, %v323
    %v633 = vld [vmem:[%s4] sm:$0xff]
    %v634 = vld [vmem:[%s5] sm:$0xff]
    %636 = vset.pattern.permute.xlu0 0
    %637 = vperm.xlu0 %636, %v634
    %v638 = vpop.permute.xlu0 %637
    %v641 = vsel %vm335, %v633, 0
    %643 = vmatprep.subr.mxu0 %v506
    %644 = vmatpush1.msra.mxu0 %v505
    %645 = vmatprep.subr.mxu0 %v522
    %646 = vmatpush1.msra.mxu0 %v521
    %647 = vmatprep.subr.mxu0 %v538
    %648 = vmatpush1.msra.mxu0 %v537
    %649 = vmatprep.subr.mxu0 %v554
    %650 = vmatpush1.msra.mxu0 %v553
    %651 = vmatprep.subr.mxu0 %v566
    %652 = vmatpush1.msra.mxu0 %v565
    %653 = vmatprep.subr.mxu0 %v582
    %654 = vmatpush1.msra.mxu0 %v581
    %655 = vmatprep.subr.mxu0 %v598
    %656 = vmatpush1.msra.mxu0 %v597
    %657 = vmatprep.subr.mxu0 %v614
    %658 = vmatpush1.msra.mxu0 %v613
    %659 = vmatprep.subr.mxu0 %v630
    %660 = vmatpush1.msra.mxu0 %v629
    %661 = vmatprep.subr.mxu0 0.0
    %662 = vmatpush1.msra.mxu0 0.0
    %663 = vmatprep.subr.mxu0 0.0
    %664 = vmatpush1.msra.mxu0 0.0
    %665 = vmatprep.subr.mxu0 0.0
    %666 = vmatpush1.msra.mxu0 0.0
    %667 = vmatprep.subr.mxu0 0.0
    %668 = vmatpush1.msra.mxu0 0.0
    %669 = vmatprep.subr.mxu0 0.0
    %670 = vmatpush1.msra.mxu0 0.0
    %671 = vmatprep.subr.mxu0 0.0
    %672 = vmatpush1.msra.mxu0 0.0
    %673 = vmatprep.subr.mxu0 0.0
    %674 = vmatpush1.msra.mxu0 0.0
    %675 = vmatprep.subr.mxu0 0.0
    %676 = vmatpush1.msra.mxu0 0.0
    %677 = vmatprep.subr.mxu0 0.0
    %678 = vmatpush1.msra.mxu0 0.0
    %679 = vmatprep.subr.mxu0 0.0
    %680 = vmatpush1.msra.mxu0 0.0
    %681 = vmatprep.subr.mxu0 0.0
    %682 = vmatpush1.msra.mxu0 0.0
    %683 = vmatprep.subr.mxu0 0.0
    %684 = vmatpush1.msra.mxu0 0.0
    %685 = vmatprep.subr.mxu0 0.0
    %686 = vmatpush1.msra.mxu0 0.0
    %687 = vmatprep.subr.mxu0 0.0
    %688 = vmatpush1.msra.mxu0 0.0
    %689 = vmatprep.subr.mxu0 0.0
    %690 = vmatpush1.msra.mxu0 0.0
    %691 = vmatprep.subr.mxu0 0.0
    %692 = vmatpush1.msra.mxu0 0.0
    %693 = vmatprep.subr.mxu0 0.0
    %694 = vmatpush1.msra.mxu0 0.0
    %695 = vmatprep.subr.mxu0 0.0
    %696 = vmatpush1.msra.mxu0 0.0
    %697 = vmatprep.subr.mxu0 0.0
    %698 = vmatpush1.msra.mxu0 0.0
    %699 = vmatprep.subr.mxu0 0.0
    %700 = vmatpush1.msra.mxu0 0.0
    %701 = vmatprep.subr.mxu0 0.0
    %702 = vmatpush1.msra.mxu0 0.0
    %703 = vmatprep.subr.mxu0 0.0
    %704 = vmatpush1.msra.mxu0 0.0
    %705 = vmatprep.subr.mxu0 0.0
    %706 = vmatpush1.msra.mxu0 0.0
    %707 = vmatprep.mubr.f32.mxu0 0.0
    %708 = vmatmul.mubr.f32.gmra.mrb[0].mxu0 %v641
    %v709 = vpop.f32.mrb[0].mxu0
    %v710 = vadd.f32 %v638, %v709
    %v711 = vpop.f32.mrb[0].mxu0
    %v712 = vadd.f32 %v638, %v711
    %713 = vdwg.mxu0
    %714 = vmatprep.subr.mxu0 %v508
    %715 = vmatpush1.msra.mxu0 %v507
    %716 = vmatprep.subr.mxu0 %v524
    %717 = vmatpush1.msra.mxu0 %v523
    %718 = vmatprep.subr.mxu0 %v540
    %719 = vmatpush1.msra.mxu0 %v539
    %720 = vmatprep.subr.mxu0 %v556
    %721 = vmatpush1.msra.mxu0 %v555
    %722 = vmatprep.subr.mxu0 %v568
    %723 = vmatpush1.msra.mxu0 %v567
    %724 = vmatprep.subr.mxu0 %v584
    %725 = vmatpush1.msra.mxu0 %v583
    %726 = vmatprep.subr.mxu0 %v600
    %727 = vmatpush1.msra.mxu0 %v599
    %728 = vmatprep.subr.mxu0 %v616
    %729 = vmatpush1.msra.mxu0 %v615
    %730 = vmatprep.subr.mxu0 %v632
    %731 = vmatpush1.msra.mxu0 %v631
    %732 = vmatprep.subr.mxu0 0.0
    %733 = vmatpush1.msra.mxu0 0.0
    %734 = vmatprep.subr.mxu0 0.0
    %735 = vmatpush1.msra.mxu0 0.0
    %736 = vmatprep.subr.mxu0 0.0
    %737 = vmatpush1.msra.mxu0 0.0
    %738 = vmatprep.subr.mxu0 0.0
    %739 = vmatpush1.msra.mxu0 0.0
    %740 = vmatprep.subr.mxu0 0.0
    %741 = vmatpush1.msra.mxu0 0.0
    %742 = vmatprep.subr.mxu0 0.0
    %743 = vmatpush1.msra.mxu0 0.0
    %744 = vmatprep.subr.mxu0 0.0
    %745 = vmatpush1.msra.mxu0 0.0
    %746 = vmatprep.subr.mxu0 0.0
    %747 = vmatpush1.msra.mxu0 0.0
    %748 = vmatprep.subr.mxu0 0.0
    %749 = vmatpush1.msra.mxu0 0.0
    %750 = vmatprep.subr.mxu0 0.0
    %751 = vmatpush1.msra.mxu0 0.0
    %752 = vmatprep.subr.mxu0 0.0
    %753 = vmatpush1.msra.mxu0 0.0
    %754 = vmatprep.subr.mxu0 0.0
    %755 = vmatpush1.msra.mxu0 0.0
    %756 = vmatprep.subr.mxu0 0.0
    %757 = vmatpush1.msra.mxu0 0.0
    %758 = vmatprep.subr.mxu0 0.0
    %759 = vmatpush1.msra.mxu0 0.0
    %760 = vmatprep.subr.mxu0 0.0
    %761 = vmatpush1.msra.mxu0 0.0
    %762 = vmatprep.subr.mxu0 0.0
    %763 = vmatpush1.msra.mxu0 0.0
    %764 = vmatprep.subr.mxu0 0.0
    %765 = vmatpush1.msra.mxu0 0.0
    %766 = vmatprep.subr.mxu0 0.0
    %767 = vmatpush1.msra.mxu0 0.0
    %768 = vmatprep.subr.mxu0 0.0
    %769 = vmatpush1.msra.mxu0 0.0
    %770 = vmatprep.subr.mxu0 0.0
    %771 = vmatpush1.msra.mxu0 0.0
    %772 = vmatprep.subr.mxu0 0.0
    %773 = vmatpush1.msra.mxu0 0.0
    %774 = vmatprep.subr.mxu0 0.0
    %775 = vmatpush1.msra.mxu0 0.0
    %776 = vmatprep.subr.mxu0 0.0
    %777 = vmatpush1.msra.mxu0 0.0
    %778 = vmatprep.mubr.f32.mxu0 0.0
    %779 = vmatmul.mubr.f32.gmra.mrb[0].mxu0 %v641
    %v780 = vpop.f32.mrb[0].mxu0
    %v781 = vadd.f32 %v638, %v780
    %v782 = vpop.f32.mrb[0].mxu0
    %v783 = vadd.f32 %v638, %v782
    %784 = vdwg.mxu0
    %v785 = vmax.f32 %v710, 0.0
    %v786 = vmax.f32 %v712, 0.0
    %v787 = vmax.f32 %v781, 0.0
    %v788 = vmax.f32 %v783, 0.0
    %789 = vrot.lane.b32.xlu0 %v785, 17
    %v790 = vpop.permute.xlu0 %789
    %791 = vrot.lane.b32.xlu0 %v786, 17
    %v792 = vpop.permute.xlu0 %791
    %793 = vrot.lane.b32.xlu0 %v787, 17
    %v794 = vpop.permute.xlu0 %793
    %795 = vrot.lane.b32.xlu0 %v788, 17
    %v796 = vpop.permute.xlu0 %795
    %v797 = vsel %vm72, %v794, %v796
    %v798 = vsel %vm72, %v792, %v794
    %v799 = vsel %vm72, %v790, %v792
    %v800 = vsel %vm72, %v796, %v790
    %v801 = vmul.f32 %v800, %v80
    %v802 = vmul.f32 %v799, %v84
    %v803 = vmul.f32 %v798, %v88
    %v804 = vmul.f32 %v797, %v92
    %805 = vrot.lane.b32.xlu0 %v785, 16
    %v806 = vpop.permute.xlu0 %805
    %807 = vrot.lane.b32.xlu0 %v786, 16
    %v808 = vpop.permute.xlu0 %807
    %809 = vrot.lane.b32.xlu0 %v787, 16
    %v810 = vpop.permute.xlu0 %809
    %811 = vrot.lane.b32.xlu0 %v788, 16
    %v812 = vpop.permute.xlu0 %811
    %v813 = vsel %vm105, %v810, %v812
    %v814 = vsel %vm105, %v808, %v810
    %v815 = vsel %vm105, %v806, %v808
    %v816 = vsel %vm105, %v812, %v806
    %v817 = vmul.f32 %v816, %v113
    %v818 = vmul.f32 %v815, %v117
    %v819 = vmul.f32 %v814, %v121
    %v820 = vmul.f32 %v813, %v125
    %821 = vrot.lane.b32.xlu0 %v785, 15
    %v822 = vpop.permute.xlu0 %821
    %823 = vrot.lane.b32.xlu0 %v786, 15
    %v824 = vpop.permute.xlu0 %823
    %825 = vrot.lane.b32.xlu0 %v787, 15
    %v826 = vpop.permute.xlu0 %825
    %827 = vrot.lane.b32.xlu0 %v788, 15
    %v828 = vpop.permute.xlu0 %827
    %v829 = vsel %vm138, %v826, %v828
    %v830 = vsel %vm138, %v824, %v826
    %v831 = vsel %vm138, %v822, %v824
    %v832 = vsel %vm138, %v828, %v822
    %v833 = vmul.f32 %v832, %v146
    %v834 = vmul.f32 %v831, %v150
    %v835 = vmul.f32 %v830, %v154
    %v836 = vmul.f32 %v829, %v158
    %837 = vrot.lane.b32.xlu0 %v785, 1
    %v838 = vpop.permute.xlu0 %837
    %839 = vrot.lane.b32.xlu0 %v786, 1
    %v840 = vpop.permute.xlu0 %839
    %841 = vrot.lane.b32.xlu0 %v787, 1
    %v842 = vpop.permute.xlu0 %841
    %843 = vrot.lane.b32.xlu0 %v788, 1
    %v844 = vpop.permute.xlu0 %843
    %v845 = vsel %vm171, %v842, %v844
    %v846 = vsel %vm171, %v840, %v842
    %v847 = vsel %vm171, %v838, %v840
    %v848 = vsel %vm171, %v844, %v838
    %v849 = vmul.f32 %v848, %v179
    %v850 = vmul.f32 %v847, %v183
    %v851 = vmul.f32 %v846, %v187
    %v852 = vmul.f32 %v845, %v191
    %853 = vrot.lane.b32.xlu0 %v785, 127
    %v854 = vpop.permute.xlu0 %853
    %855 = vrot.lane.b32.xlu0 %v786, 127
    %v856 = vpop.permute.xlu0 %855
    %857 = vrot.lane.b32.xlu0 %v787, 127
    %v858 = vpop.permute.xlu0 %857
    %859 = vrot.lane.b32.xlu0 %v788, 127
    %v860 = vpop.permute.xlu0 %859
    %v861 = vsel %vm204, %v858, %v860
    %v862 = vsel %vm204, %v856, %v858
    %v863 = vsel %vm204, %v854, %v856
    %v864 = vsel %vm204, %v860, %v854
    %v865 = vmul.f32 %v863, %v212
    %v866 = vmul.f32 %v862, %v216
    %v867 = vmul.f32 %v861, %v220
    %v868 = vmul.f32 %v864, %v224
    %869 = vrot.lane.b32.xlu0 %v785, 113
    %v870 = vpop.permute.xlu0 %869
    %871 = vrot.lane.b32.xlu0 %v786, 113
    %v872 = vpop.permute.xlu0 %871
    %873 = vrot.lane.b32.xlu0 %v787, 113
    %v874 = vpop.permute.xlu0 %873
    %875 = vrot.lane.b32.xlu0 %v788, 113
    %v876 = vpop.permute.xlu0 %875
    %v877 = vsel %vm237, %v874, %v876
    %v878 = vsel %vm237, %v872, %v874
    %v879 = vsel %vm237, %v870, %v872
    %v880 = vsel %vm237, %v876, %v870
    %v881 = vmul.f32 %v879, %v245
    %v882 = vmul.f32 %v878, %v249
    %v883 = vmul.f32 %v877, %v253
    %v884 = vmul.f32 %v880, %v257
    %885 = vrot.lane.b32.xlu0 %v785, 112
    %v886 = vpop.permute.xlu0 %885
    %887 = vrot.lane.b32.xlu0 %v786, 112
    %v888 = vpop.permute.xlu0 %887
    %889 = vrot.lane.b32.xlu0 %v787, 112
    %v890 = vpop.permute.xlu0 %889
    %891 = vrot.lane.b32.xlu0 %v788, 112
    %v892 = vpop.permute.xlu0 %891
    %v893 = vsel %vm270, %v890, %v892
    %v894 = vsel %vm270, %v888, %v890
    %v895 = vsel %vm270, %v886, %v888
    %v896 = vsel %vm270, %v892, %v886
    %v897 = vmul.f32 %v895, %v278
    %v898 = vmul.f32 %v894, %v282
    %v899 = vmul.f32 %v893, %v286
    %v900 = vmul.f32 %v896, %v290
    %901 = vrot.lane.b32.xlu0 %v785, 111
    %v902 = vpop.permute.xlu0 %901
    %903 = vrot.lane.b32.xlu0 %v786, 111
    %v904 = vpop.permute.xlu0 %903
    %905 = vrot.lane.b32.xlu0 %v787, 111
    %v906 = vpop.permute.xlu0 %905
    %907 = vrot.lane.b32.xlu0 %v788, 111
    %v908 = vpop.permute.xlu0 %907
    %v909 = vsel %vm303, %v906, %v908
    %v910 = vsel %vm303, %v904, %v906
    %v911 = vsel %vm303, %v902, %v904
    %v912 = vsel %vm303, %v908, %v902
    %v913 = vmul.f32 %v911, %v311
    %v914 = vmul.f32 %v910, %v315
    %v915 = vmul.f32 %v909, %v319
    %v916 = vmul.f32 %v912, %v323
    %v917 = vld [vmem:[%s6] sm:$0xff]
    %v918 = vld [vmem:[%s7] sm:$0xff]
    %920 = vset.pattern.permute.xlu0 0
    %921 = vperm.xlu0 %920, %v918
    %v922 = vpop.permute.xlu0 %921
    %v925 = vsel %vm335, %v917, 0
    %927 = vmatprep.subr.mxu0 %v802
    %928 = vmatpush1.msra.mxu0 %v801
    %929 = vmatprep.subr.mxu0 %v818
    %930 = vmatpush1.msra.mxu0 %v817
    %931 = vmatprep.subr.mxu0 %v834
    %932 = vmatpush1.msra.mxu0 %v833
    %933 = vmatprep.subr.mxu0 %v850
    %934 = vmatpush1.msra.mxu0 %v849
    %935 = vmatprep.subr.mxu0 %v786
    %936 = vmatpush1.msra.mxu0 %v785
    %937 = vmatprep.subr.mxu0 %v866
    %938 = vmatpush1.msra.mxu0 %v865
    %939 = vmatprep.subr.mxu0 %v882
    %940 = vmatpush1.msra.mxu0 %v881
    %941 = vmatprep.subr.mxu0 %v898
    %942 = vmatpush1.msra.mxu0 %v897
    %943 = vmatprep.subr.mxu0 %v914
    %944 = vmatpush1.msra.mxu0 %v913
    %945 = vmatprep.subr.mxu0 0.0
    %946 = vmatpush1.msra.mxu0 0.0
    %947 = vmatprep.subr.mxu0 0.0
    %948 = vmatpush1.msra.mxu0 0.0
    %949 = vmatprep.subr.mxu0 0.0
    %950 = vmatpush1.msra.mxu0 0.0
    %951 = vmatprep.subr.mxu0 0.0
    %952 = vmatpush1.msra.mxu0 0.0
    %953 = vmatprep.subr.mxu0 0.0
    %954 = vmatpush1.msra.mxu0 0.0
    %955 = vmatprep.subr.mxu0 0.0
    %956 = vmatpush1.msra.mxu0 0.0
    %957 = vmatprep.subr.mxu0 0.0
    %958 = vmatpush1.msra.mxu0 0.0
    %959 = vmatprep.subr.mxu0 0.0
    %960 = vmatpush1.msra.mxu0 0.0
    %961 = vmatprep.subr.mxu0 0.0
    %962 = vmatpush1.msra.mxu0 0.0
    %963 = vmatprep.subr.mxu0 0.0
    %964 = vmatpush1.msra.mxu0 0.0
    %965 = vmatprep.subr.mxu0 0.0
    %966 = vmatpush1.msra.mxu0 0.0
    %967 = vmatprep.subr.mxu0 0.0
    %968 = vmatpush1.msra.mxu0 0.0
    %969 = vmatprep.subr.mxu0 0.0
    %970 = vmatpush1.msra.mxu0 0.0
    %971 = vmatprep.subr.mxu0 0.0
    %972 = vmatpush1.msra.mxu0 0.0
    %973 = vmatprep.subr.mxu0 0.0
    %974 = vmatpush1.msra.mxu0 0.0
    %975 = vmatprep.subr.mxu0 0.0
    %976 = vmatpush1.msra.mxu0 0.0
    %977 = vmatprep.subr.mxu0 0.0
    %978 = vmatpush1.msra.mxu0 0.0
    %979 = vmatprep.subr.mxu0 0.0
    %980 = vmatpush1.msra.mxu0 0.0
    %981 = vmatprep.subr.mxu0 0.0
    %982 = vmatpush1.msra.mxu0 0.0
    %983 = vmatprep.subr.mxu0 0.0
    %984 = vmatpush1.msra.mxu0 0.0
    %985 = vmatprep.subr.mxu0 0.0
    %986 = vmatpush1.msra.mxu0 0.0
    %987 = vmatprep.subr.mxu0 0.0
    %988 = vmatpush1.msra.mxu0 0.0
    %989 = vmatprep.subr.mxu0 0.0
    %990 = vmatpush1.msra.mxu0 0.0
    %991 = vmatprep.mubr.f32.mxu0 0.0
    %992 = vmatmul.mubr.f32.gmra.mrb[0].mxu0 %v925
    %v993 = vpop.f32.mrb[0].mxu0
    %v994 = vadd.f32 %v922, %v993
    %v995 = vpop.f32.mrb[0].mxu0
    %v996 = vadd.f32 %v922, %v995
    %997 = vdwg.mxu0
    %998 = vmatprep.subr.mxu0 %v804
    %999 = vmatpush1.msra.mxu0 %v803
    %1000 = vmatprep.subr.mxu0 %v820
    %1001 = vmatpush1.msra.mxu0 %v819
    %1002 = vmatprep.subr.mxu0 %v836
    %1003 = vmatpush1.msra.mxu0 %v835
    %1004 = vmatprep.subr.mxu0 %v852
    %1005 = vmatpush1.msra.mxu0 %v851
    %1006 = vmatprep.subr.mxu0 %v788
    %1007 = vmatpush1.msra.mxu0 %v787
    %1008 = vmatprep.subr.mxu0 %v868
    %1009 = vmatpush1.msra.mxu0 %v867
    %1010 = vmatprep.subr.mxu0 %v884
    %1011 = vmatpush1.msra.mxu0 %v883
    %1012 = vmatprep.subr.mxu0 %v900
    %1013 = vmatpush1.msra.mxu0 %v899
    %1014 = vmatprep.subr.mxu0 %v916
    %1015 = vmatpush1.msra.mxu0 %v915
    %1016 = vmatprep.subr.mxu0 0.0
    %1017 = vmatpush1.msra.mxu0 0.0
    %1018 = vmatprep.subr.mxu0 0.0
    %1019 = vmatpush1.msra.mxu0 0.0
    %1020 = vmatprep.subr.mxu0 0.0
    %1021 = vmatpush1.msra.mxu0 0.0
    %1022 = vmatprep.subr.mxu0 0.0
    %1023 = vmatpush1.msra.mxu0 0.0
    %1024 = vmatprep.subr.mxu0 0.0
    %1025 = vmatpush1.msra.mxu0 0.0
    %1026 = vmatprep.subr.mxu0 0.0
    %1027 = vmatpush1.msra.mxu0 0.0
    %1028 = vmatprep.subr.mxu0 0.0
    %1029 = vmatpush1.msra.mxu0 0.0
    %1030 = vmatprep.subr.mxu0 0.0
    %1031 = vmatpush1.msra.mxu0 0.0
    %1032 = vmatprep.subr.mxu0 0.0
    %1033 = vmatpush1.msra.mxu0 0.0
    %1034 = vmatprep.subr.mxu0 0.0
    %1035 = vmatpush1.msra.mxu0 0.0
    %1036 = vmatprep.subr.mxu0 0.0
    %1037 = vmatpush1.msra.mxu0 0.0
    %1038 = vmatprep.subr.mxu0 0.0
    %1039 = vmatpush1.msra.mxu0 0.0
    %1040 = vmatprep.subr.mxu0 0.0
    %1041 = vmatpush1.msra.mxu0 0.0
    %1042 = vmatprep.subr.mxu0 0.0
    %1043 = vmatpush1.msra.mxu0 0.0
    %1044 = vmatprep.subr.mxu0 0.0
    %1045 = vmatpush1.msra.mxu0 0.0
    %1046 = vmatprep.subr.mxu0 0.0
    %1047 = vmatpush1.msra.mxu0 0.0
    %1048 = vmatprep.subr.mxu0 0.0
    %1049 = vmatpush1.msra.mxu0 0.0
    %1050 = vmatprep.subr.mxu0 0.0
    %1051 = vmatpush1.msra.mxu0 0.0
    %1052 = vmatprep.subr.mxu0 0.0
    %1053 = vmatpush1.msra.mxu0 0.0
    %1054 = vmatprep.subr.mxu0 0.0
    %1055 = vmatpush1.msra.mxu0 0.0
    %1056 = vmatprep.subr.mxu0 0.0
    %1057 = vmatpush1.msra.mxu0 0.0
    %1058 = vmatprep.subr.mxu0 0.0
    %1059 = vmatpush1.msra.mxu0 0.0
    %1060 = vmatprep.subr.mxu0 0.0
    %1061 = vmatpush1.msra.mxu0 0.0
    %1062 = vmatprep.mubr.f32.mxu0 0.0
    %1063 = vmatmul.mubr.f32.gmra.mrb[0].mxu0 %v925
    %v1064 = vpop.f32.mrb[0].mxu0
    %v1065 = vadd.f32 %v922, %v1064
    %v1066 = vpop.f32.mrb[0].mxu0
    %v1067 = vadd.f32 %v922, %v1066
    %1068 = vdwg.mxu0
    %v1069 = vadd.f32 %v994, %v406
    %v1070 = vadd.f32 %v996, %v408
    %v1071 = vadd.f32 %v1065, %v477
    %v1072 = vadd.f32 %v1067, %v479
    %1073 = vst [vmem:[#allocation5] sm:$0xff] %v1069
    %1074 = vst [vmem:[#allocation5 + $0x8] sm:$0xff] %v1070
    %1075 = vst [vmem:[#allocation5 + $0x10] sm:$0xff] %v1071
    %1076 = vst [vmem:[#allocation5 + $0x18] sm:$0xff] %v1072
    // Predicated region
    $region46: #{tpu_custom_call.1} parent=1 // pred_check
      _
    $region47: #{tpu_custom_call.1} parent=1 // pred_check_branch
      %1078 = sbr.rel (0) target = $region49
    $region48: #{tpu_custom_call.1} parent=1 // pred_region
      %s1080 = ssub.s32 512, 512
      %1081 = vsyncadd [#allocation4], %s1080
      %s1083 = sshll.u32 [#allocation5], 4
      %s1084 = int_to_ptr.vmem [resolvable:$true] %s1083
      %1086 = dma.vmem_to_hbm [thread:$0]  %s1084, 512, %s10, [#allocation4]
    $region49: #{tpu_custom_call.1} parent=1 // pred_fallthru
      _
    // Predicated region
    $region50: #{tpu_custom_call.1} parent=1 // pred_check
      _
    $region51: #{tpu_custom_call.1} parent=1 // pred_check_branch
      %1088 = sbr.rel (0) target = $region53
    $region52: #{tpu_custom_call.1} parent=1 // pred_region
      %1089 = dma.done [#allocation4], 512
    $region53: #{tpu_custom_call.1} parent=1 // pred_fallthru
      _
    %1090 = vsyncpa [#allocation3], 1
    %1091 = vsyncpa [#allocation4], 1

</llo_original>
